<compile_context>
chip_gen: v7x
topology: tpu7x:2x2x1
jax: 0.10.0
libtpu: 0.0.40
codegen_flags: <defaults>
</compile_context>

<pallas_src>
import functools

import jax
import jax.numpy as jnp
from jax.experimental import pallas as pl
from jax.experimental.pallas import tpu as pltpu


def attention_kernel(q_ref, c_ref, w_in_t_ref, w_out_t_ref, o_ref, *scratch,
                     merge_out=True):
    """One grid step processes `block_b` whole batch elements.

    q_ref      : (Bb, O, D)   compute-dtype query block
    c_ref      : (Bb, Q, D)   compute-dtype context block
    w_in_t_ref : (D, D)       W_in^T   (grid-invariant, VMEM-resident)
    w_out_t_ref: (2D, D)      W_out^T  rows ordered [mix | query]
    o_ref      : (Bb, O, D)   output block (query dtype)
    scratch[0] : (Bb*O, 2D)   VMEM staging for the merged linear_out matmul
                              (only present when merge_out=True)
    """
    bb, o_len, d = q_ref.shape
    cdt = q_ref.dtype                        # MXU operand dtype (f32 or bf16)
    # EUP approx reciprocal only on the reduced-precision path so the tight f32
    # reference check stays valid.
    approx = bool(cdt != jnp.float32)

    q2d = q_ref[...].reshape(bb * o_len, d)                     # (Bb*O, D)
    c = c_ref[...]                                              # (Bb, Q, D)

    # linear_in: qg = q @ W_in^T  (f32 accumulation on the MXU)
    qg2d_f32 = jnp.dot(q2d, w_in_t_ref[...],
                       preferred_element_type=jnp.float32)      # (Bb*O, D)
    qg2d = qg2d_f32.astype(cdt)
    qg = qg2d.reshape(bb, o_len, d)                             # (Bb, O, D)

    # attention scores: batched contraction on the shared last (lane) dim, so the
    # context tile is not transposed by us.
    scores = jnp.einsum('bod,bqd->boq', qg, c,
                        preferred_element_type=jnp.float32)     # (Bb, O, Q)

    # softmax over Q, entirely in f32 (Q is never padded -> no masking needed).
    m = jnp.max(scores, axis=-1, keepdims=True)
    e = jnp.exp(scores - m)
    w = e * pl.reciprocal(jnp.sum(e, axis=-1, keepdims=True), approx=approx)

    # mix = weights @ context  (batched, f32 accumulation)
    mix2d = jnp.einsum('boq,bqd->bod', w.astype(cdt), c,
                       preferred_element_type=jnp.float32
                       ).reshape(bb * o_len, d).astype(cdt)     # (Bb*O, D)

    if merge_out:
        # v6e/v7x path: stage [mix | qg] straight into VMEM scratch (no
        # jnp.concatenate copy) and run ONE K=2D matmul (fills the 256-deep MXU).
        comb_ref = scratch[0]
        comb_ref[:, :d] = mix2d
        comb_ref[:, d:] = qg2d
        out = jnp.dot(comb_ref[...], w_out_t_ref[...],
                      preferred_element_type=jnp.float32)       # (Bb*O, D)
    else:
        # v5e path: the MXU is only 128 deep, so K=2D would be split anyway;
        # two K=D dots avoid any staging store through the single vst slot.
        out = (jnp.dot(mix2d, w_out_t_ref[:d, :],
                       preferred_element_type=jnp.float32)
               + jnp.dot(qg2d, w_out_t_ref[d:, :],
                         preferred_element_type=jnp.float32))

    o_ref[...] = jnp.tanh(out).reshape(bb, o_len, d).astype(o_ref.dtype)


def _default_vmem_limit_bytes():
    """Scoped-VMEM limit ~75% of physical VMEM; conservative 64 MiB assumption
    (v7x per-TensorCore capacity) if the hardware query is unavailable."""
    cap = None
    try:
        info = pltpu.get_tpu_info()
        for attr in ("vmem_capacity_bytes", "vmem_size_bytes", "vmem_bytes"):
            val = getattr(info, attr, None)
            if val:
                cap = int(val)
                break
    except Exception:
        cap = None
    if cap is None:
        cap = 64 << 20
    return max(32 << 20, int(cap * 0.75))


def _pick_block_b(B, O, Q, D, bytes_c, bytes_out, vmem_budget, sublane, merge_out):
    """Largest divisor of B whose per-step working set fits the VMEM budget,
    capped at B//2 so the grid has >= 2 steps (keeps both v7x TensorCores busy),
    preferring block_b*O aligned to the sublane packing."""
    def step_bytes(bb):
        rows = bb * O
        q_blk = 2 * rows * D * bytes_c           # double-buffered query block
        c_blk = 2 * bb * Q * D * bytes_c         # double-buffered context block
        o_blk = 2 * rows * D * bytes_out         # double-buffered output block
        w_blk = 2 * 3 * D * D * bytes_c          # both weights (double-buffered)
        comb = rows * 2 * D * bytes_c if merge_out else 0
        live = 2 * bb * O * Q * 4 + 3 * rows * D * 4   # f32 intermediates headroom
        return q_blk + c_blk + o_blk + w_blk + comb + live

    divisors = [v for v in range(1, B + 1) if B % v == 0]
    cap = max((v for v in divisors if v <= max(B // 2, 1)), default=1)
    fitting = [v for v in divisors if v <= cap and step_bytes(v) <= vmem_budget]
    if not fitting:
        return 1
    aligned = [v for v in fitting if (v * O) % sublane == 0]
    return max(aligned) if aligned else max(fitting)


def prepare_attention_weights(w_in, w_out, compute_dtype=jnp.bfloat16):
    """Cast + transpose the Linear weights ONCE (hoist out of the hot path).

    w_in : (D, D)   linear_in.weight   ->  W_in^T  (D, D)
    w_out: (D, 2D)  linear_out.weight  ->  W_out^T (2D, D), rows = [mix | query]
    """
    return (jnp.asarray(w_in, compute_dtype).T,
            jnp.asarray(w_out, compute_dtype).T)


def attention_general(query, context, w_in, w_out, *, block_b=None,
                      compute_dtype=None, weights_prepared=False,
                      merge_output_matmul=True, vmem_limit_bytes=None):
    """query: (B,O,D), context: (B,Q,D) -> (B,O,D).

    compute_dtype: MXU operand dtype (default bfloat16; accumulation and softmax
    always run in f32).  merge_output_matmul=True is the v6e/v7x path (single
    K=2D matmul from scratch); pass False on v5e (two K=D dots, no staging).
    weights_prepared=True means (w_in, w_out) are already the outputs of
    prepare_attention_weights (W_in^T, W_out^T).
    """
    B, O, D = query.shape
    Q = context.shape[1]
    out_dtype = query.dtype

    if weights_prepared:
        w_in_t, w_out_t = w_in, w_out
        if compute_dtype is None:
            compute_dtype = w_in_t.dtype
        w_in_t = w_in_t.astype(compute_dtype)
        w_out_t = w_out_t.astype(compute_dtype)
    else:
        if compute_dtype is None:
            compute_dtype = jnp.bfloat16            # production default
        w_in_t, w_out_t = prepare_attention_weights(w_in, w_out, compute_dtype)

    assert w_in_t.shape == (D, D)
    assert w_out_t.shape == (2 * D, D)

    compute_dtype = jnp.dtype(compute_dtype)
    bytes_c = compute_dtype.itemsize
    bytes_out = jnp.dtype(out_dtype).itemsize

    if vmem_limit_bytes is None:
        vmem_limit_bytes = _default_vmem_limit_bytes()

    if block_b is None:
        sublane = 8 if bytes_c >= 4 else (16 if bytes_c == 2 else 32)
        block_b = _pick_block_b(B, O, Q, D, bytes_c, bytes_out,
                                vmem_budget=int(0.6 * vmem_limit_bytes),
                                sublane=sublane,
                                merge_out=merge_output_matmul)
    assert B % block_b == 0, "block_b must divide the batch size"

    q = query.astype(compute_dtype)
    c = context.astype(compute_dtype)

    kernel = functools.partial(attention_kernel, merge_out=merge_output_matmul)
    scratch_shapes = ((pltpu.VMEM((block_b * O, 2 * D), compute_dtype),)
                      if merge_output_matmul else ())

    return pl.pallas_call(
        kernel,
        out_shape=jax.ShapeDtypeStruct((B, O, D), out_dtype),
        grid_spec=pltpu.PrefetchScalarGridSpec(
            num_scalar_prefetch=0,
            grid=(B // block_b,),
            in_specs=[
                pl.BlockSpec((block_b, O, D), lambda b: (b, 0, 0)),
                pl.BlockSpec((block_b, Q, D), lambda b: (b, 0, 0)),
                # Grid-invariant weights: constant index_map -> stay VMEM-resident.
                pl.BlockSpec((D, D), lambda b: (0, 0)),
                pl.BlockSpec((2 * D, D), lambda b: (0, 0)),
            ],
            out_specs=pl.BlockSpec((block_b, O, D), lambda b: (b, 0, 0)),
            scratch_shapes=scratch_shapes,
        ),
        compiler_params=pltpu.CompilerParams(
            dimension_semantics=("parallel",),
            vmem_limit_bytes=int(vmem_limit_bytes)),
    )(q, c, w_in_t, w_out_t)


def attention_ref(query, context, w_in, w_out):
    """Pure-JAX reference mirroring the PyTorch forward (f32)."""
    qg = jnp.einsum('bod,ed->boe', query, w_in)
    scores = jnp.einsum('bod,bqd->boq', qg, context)
    weights = jax.nn.softmax(scores, axis=-1)
    mix = jnp.einsum('boq,bqd->bod', weights, context)
    combined = jnp.concatenate([mix, qg], axis=-1)
    out = jnp.einsum('boc,dc->bod', combined, w_out)
    return jnp.tanh(out)


if __name__ == "__main__":
    # Small shapes; with B=16 the auto block_b is capped at 8 so the grid has
    # 2 "parallel" steps (both v7x TensorCores get work).
    B, O, Q, D = 16, 8, 8, 128

    key = jax.random.PRNGKey(0)
    k_q, k_c, k_win, k_wout = jax.random.split(key, 4)
    query = jax.random.normal(k_q, (B, O, D), dtype=jnp.float32)
    context = jax.random.normal(k_c, (B, Q, D), dtype=jnp.float32)
    # Deterministic "init" of the two bias-free Linear layers.
    w_in = jax.random.normal(k_win, (D, D), dtype=jnp.float32) * (1.0 / D**0.5)
    w_out = jax.random.normal(k_wout, (D, 2 * D), dtype=jnp.float32) * (1.0 / (2 * D)**0.5)

    ref = attention_ref(query, context, w_in, w_out)

    # 1) f32 MXU operands, merged K=2D linear_out (v6e/v7x path): tight check.
    out_f32 = attention_general(query, context, w_in, w_out,
                                compute_dtype=jnp.float32)
    jax.block_until_ready(out_f32)
    assert out_f32.shape == (B, O, D)
    assert jnp.allclose(out_f32, ref, atol=1e-5, rtol=1e-5), "f32 mismatch vs reference"

    # 2) bf16 operands (f32 accumulation/softmax), weights prepared once up
    #    front (hoisted cast/transpose), split linear_out (v5e path), explicit
    #    block_b exercising a longer grid.
    w_in_t, w_out_t = prepare_attention_weights(w_in, w_out, jnp.bfloat16)
    out_bf16 = attention_general(query, context, w_in_t, w_out_t,
                                 weights_prepared=True, block_b=4,
                                 merge_output_matmul=False)
    jax.block_until_ready(out_bf16)
    assert jnp.allclose(out_bf16, ref, atol=1.5e-1, rtol=0.0), "bf16 mismatch vs reference"

    # 3) Full default production path: bf16 operands, VMEM-budget-driven block_b,
    #    scratch-staged merged K=2D linear_out.
    out_def = attention_general(query, context, w_in, w_out)
    jax.block_until_ready(out_def)
    assert jnp.allclose(out_def, ref, atol=1.5e-1, rtol=0.0), "default-path mismatch"

    print("KERNEL_OK")
</pallas_src>

<mosaic_0001>
module attributes {stable_mosaic.version = 11 : i64} {
  func.func @attention_kernel(%arg0: i32, %arg1: memref<8x8x128xf32, #tpu.memory_space<vmem>>, %arg2: memref<8x8x128xf32, #tpu.memory_space<vmem>>, %arg3: memref<128x128xf32, #tpu.memory_space<vmem>>, %arg4: memref<256x128xf32, #tpu.memory_space<vmem>>, %arg5: memref<8x8x128xf32, #tpu.memory_space<vmem>>, %arg6: memref<64x256xf32, #tpu.memory_space<vmem>>) attributes {dimension_semantics = [#tpu.dimension_semantics<parallel>], iteration_bounds = array<i64: 2>, scalar_prefetch = 0 : i64, scratch_operands = 1 : i64, tpu.core_type = #tpu.core_type<tc>, window_params = [{transform_indices = @transform_0, window_bounds = array<i64: 8, 8, 128>}, {transform_indices = @transform_1, window_bounds = array<i64: 8, 8, 128>}, {pipeline_mode = #tpu.pipeline_mode<synchronous>, transform_indices = @transform_2, window_bounds = array<i64: 128, 128>}, {pipeline_mode = #tpu.pipeline_mode<synchronous>, transform_indices = @transform_3, window_bounds = array<i64: 256, 128>}, {transform_indices = @transform_4, window_bounds = array<i64: 8, 8, 128>}]} {
    %c0 = arith.constant 0 : index
    %c0_0 = arith.constant 0 : index
    %c0_1 = arith.constant 0 : index
    %0 = vector.load %arg1[%c0, %c0_0, %c0_1] : memref<8x8x128xf32, #tpu.memory_space<vmem>>, vector<8x8x128xf32>
    %1 = vector.shape_cast %0 : vector<8x8x128xf32> to vector<64x128xf32>
    %c0_2 = arith.constant 0 : index
    %c0_3 = arith.constant 0 : index
    %c0_4 = arith.constant 0 : index
    %2 = vector.load %arg2[%c0_2, %c0_3, %c0_4] : memref<8x8x128xf32, #tpu.memory_space<vmem>>, vector<8x8x128xf32>
    %c0_5 = arith.constant 0 : index
    %c0_6 = arith.constant 0 : index
    %3 = vector.load %arg3[%c0_5, %c0_6] : memref<128x128xf32, #tpu.memory_space<vmem>>, vector<128x128xf32>
    %cst = arith.constant dense<0.000000e+00> : vector<64x128xf32>
    %4 = tpu.matmul %1, %3, %cst {dimension_numbers = #tpu.dot_dimension_numbers<[1], [0], [0], [1], [0, 0, 1, 1], [], []>} : vector<64x128xf32>, vector<128x128xf32>, vector<64x128xf32> -> vector<64x128xf32>
    %5 = vector.shape_cast %4 : vector<64x128xf32> to vector<8x8x128xf32>
    "tpu.trace_start"() <{level = 10 : i32, message = "bod,bqd->boq"}> : () -> ()
    %cst_7 = arith.constant dense<0.000000e+00> : vector<8x8x8xf32>
    %6 = tpu.matmul %5, %2, %cst_7 {dimension_numbers = #tpu.dot_dimension_numbers<[2], [2], [1], [1], [0, 0, 0, 1, 1, 1], [0], [0]>} : vector<8x8x128xf32>, vector<8x8x128xf32>, vector<8x8x8xf32> -> vector<8x8x8xf32>
    "tpu.trace_stop"() : () -> ()
    %cst_8 = arith.constant dense<0xFF800000> : vector<8x8xf32>
    %7 = vector.multi_reduction <maximumf>, %6, %cst_8 [2] : vector<8x8x8xf32> to vector<8x8xf32>
    %8 = vector.shape_cast %7 : vector<8x8xf32> to vector<8x8x1xf32>
    %9 = vector.broadcast %8 : vector<8x8x1xf32> to vector<8x8x8xf32>
    %10 = arith.subf %6, %9 : vector<8x8x8xf32>
    %11 = math.exp %10 : vector<8x8x8xf32>
    %cst_9 = arith.constant dense<0.000000e+00> : vector<8x8xf32>
    %12 = vector.multi_reduction <add>, %11, %cst_9 [2] : vector<8x8x8xf32> to vector<8x8xf32>
    %13 = vector.shape_cast %12 : vector<8x8xf32> to vector<8x8x1xf32>
    %14 = tpu.reciprocal %13 : vector<8x8x1xf32> -> vector<8x8x1xf32>
    %15 = vector.broadcast %14 : vector<8x8x1xf32> to vector<8x8x8xf32>
    %16 = arith.mulf %11, %15 : vector<8x8x8xf32>
    "tpu.trace_start"() <{level = 10 : i32, message = "boq,bqd->bod"}> : () -> ()
    %cst_10 = arith.constant dense<0.000000e+00> : vector<8x8x128xf32>
    %17 = tpu.matmul %16, %2, %cst_10 {dimension_numbers = #tpu.dot_dimension_numbers<[2], [1], [1], [2], [0, 0, 0, 1, 1, 2], [0], [0]>} : vector<8x8x8xf32>, vector<8x8x128xf32>, vector<8x8x128xf32> -> vector<8x8x128xf32>
    "tpu.trace_stop"() : () -> ()
    %18 = vector.shape_cast %17 : vector<8x8x128xf32> to vector<64x128xf32>
    %c0_11 = arith.constant 0 : index
    %c0_12 = arith.constant 0 : index
    %19 = vector.load %arg6[%c0_11, %c0_12] : memref<64x256xf32, #tpu.memory_space<vmem>>, vector<64x128xf32>
    tpu.vector_store %arg6[%c0_11, %c0_12], %18 {strides = array<i32>} : memref<64x256xf32, #tpu.memory_space<vmem>>, vector<64x128xf32>,
    %c0_13 = arith.constant 0 : index
    %c128 = arith.constant 128 : index
    %20 = vector.load %arg6[%c0_13, %c128] : memref<64x256xf32, #tpu.memory_space<vmem>>, vector<64x128xf32>
    tpu.vector_store %arg6[%c0_13, %c128], %4 {strides = array<i32>} : memref<64x256xf32, #tpu.memory_space<vmem>>, vector<64x128xf32>,
    %c0_14 = arith.constant 0 : index
    %c0_15 = arith.constant 0 : index
    %21 = vector.load %arg6[%c0_14, %c0_15] : memref<64x256xf32, #tpu.memory_space<vmem>>, vector<64x256xf32>
    %c0_16 = arith.constant 0 : index
    %c0_17 = arith.constant 0 : index
    %22 = vector.load %arg4[%c0_16, %c0_17] : memref<256x128xf32, #tpu.memory_space<vmem>>, vector<256x128xf32>
    %cst_18 = arith.constant dense<0.000000e+00> : vector<64x128xf32>
    %23 = tpu.matmul %21, %22, %cst_18 {dimension_numbers = #tpu.dot_dimension_numbers<[1], [0], [0], [1], [0, 0, 1, 1], [], []>} : vector<64x256xf32>, vector<256x128xf32>, vector<64x128xf32> -> vector<64x128xf32>
    %24 = math.tanh %23 : vector<64x128xf32>
    %25 = vector.shape_cast %24 : vector<64x128xf32> to vector<8x8x128xf32>
    %c0_19 = arith.constant 0 : index
    %c0_20 = arith.constant 0 : index
    %c0_21 = arith.constant 0 : index
    %26 = vector.load %arg5[%c0_19, %c0_20, %c0_21] : memref<8x8x128xf32, #tpu.memory_space<vmem>>, vector<8x8x128xf32>
    tpu.vector_store %arg5[%c0_19, %c0_20, %c0_21], %25 {strides = array<i32>} : memref<8x8x128xf32, #tpu.memory_space<vmem>>, vector<8x8x128xf32>,
    return
  }
  func.func @transform_0(%arg0: i32) -> (i32, i32, i32) {
    %c0_i32 = arith.constant 0 : i32
    %c0_i32_0 = arith.constant 0 : i32
    %c0_i32_1 = arith.constant 0 : i32
    return %arg0, %c0_i32, %c0_i32_0 : i32, i32, i32
  }
  func.func @transform_1(%arg0: i32) -> (i32, i32, i32) {
    %c0_i32 = arith.constant 0 : i32
    %c0_i32_0 = arith.constant 0 : i32
    %c0_i32_1 = arith.constant 0 : i32
    return %arg0, %c0_i32, %c0_i32_0 : i32, i32, i32
  }
  func.func @transform_2(%arg0: i32) -> (i32, i32) {
    %c0_i32 = arith.constant 0 : i32
    %c0_i32_0 = arith.constant 0 : i32
    %c0_i32_1 = arith.constant 0 : i32
    return %c0_i32, %c0_i32_0 : i32, i32
  }
  func.func @transform_3(%arg0: i32) -> (i32, i32) {
    %c0_i32 = arith.constant 0 : i32
    %c0_i32_0 = arith.constant 0 : i32
    %c0_i32_1 = arith.constant 0 : i32
    return %c0_i32, %c0_i32_0 : i32, i32
  }
  func.func @transform_4(%arg0: i32) -> (i32, i32, i32) {
    %c0_i32 = arith.constant 0 : i32
    %c0_i32_0 = arith.constant 0 : i32
    %c0_i32_1 = arith.constant 0 : i32
    return %arg0, %c0_i32, %c0_i32_0 : i32, i32, i32
  }
}

</mosaic_0001>

<llo_original>
// kernel: tpu_custom_call.1
$region0: #{tpu_custom_call.1}
  #allocation0 [shape = 'u32[]', space=smem, size = 0x4, offset = 0x4, fixed_abs, tag = 'smem constant byte address 0x4 - core index']
  #allocation1 [shape = 'u32[144,128]{1,0:T(1,128)}', space=vmem, size = 0x12000, scoped, tag = 'internal scratch']
  #allocation2 [shape = 'f32[64,256]{1,0:T(8,128)}', space=vmem, size = 0x10000, scoped, tag = 'scratch operand']
  %s0 = inlined_call_operand.hbm [shape: f32[16,8,128], index: 0, kind: input, shape index: {}]
  %s1 = inlined_call_operand.hbm [shape: f32[16,8,128], index: 1, kind: input, shape index: {}]
  %s2 = inlined_call_operand.hbm [shape: f32[128,128], index: 2, kind: input, shape index: {}]
  %s3 = inlined_call_operand.hbm [shape: f32[256,128], index: 3, kind: input, shape index: {}]
  %s4 = inlined_call_operand.hbm [shape: f32[16,8,128], index: 4, kind: output, shape index: {}]
  %s5 = sld [smem:[#allocation0]]
  $region65: #{tpu_custom_call.1} parent=0
    _
  %s7 = ssub.s32 1, %s5
  %s8 = scalar_select 0, %s7, %s5
  $region1: #{tpu_custom_call.1} parent=0
    #allocation3 [shape = 'u8[65536]{0}', space=vmem, size = 0x10000, scoped, tag = 'input window, operand 0']
    #allocation4 [shape = 's32[2]{0}', space=sflag, size = 0x8, scoped, tag = 'scoped memory for tpu_custom_call.1']
    #allocation5 [shape = 's32[2]{0}', space=sflag, size = 0x8, scoped, tag = 'scoped memory for tpu_custom_call.1']
    #allocation6 [shape = 'u8[65536]{0}', space=vmem, size = 0x10000, scoped, tag = 'input window, operand 1']
    #allocation7 [shape = 's32[2]{0}', space=sflag, size = 0x8, scoped, tag = 'scoped memory for tpu_custom_call.1']
    #allocation8 [shape = 'u8[65536]{0}', space=vmem, size = 0x10000, scoped, tag = 'input window, operand 2, single buffered']
    #allocation9 [shape = 'u8[131072]{0}', space=vmem, size = 0x20000, scoped, tag = 'input window, operand 3, single buffered']
    #allocation10 [shape = 's32[1]{0}', space=sflag, size = 0x4, scoped, tag = 'scoped memory for tpu_custom_call.1']
    #allocation11 [shape = 'u8[65536]{0}', space=vmem, size = 0x10000, scoped, tag = 'output window, operand 0']
    %9 = vsyncpa [#allocation4], 0
    %s10 = scalar_lea.sflag [#allocation4], 1
    %11 = vsyncpa %s10, 0
    %12 = vsyncpa [#allocation7], 0
    %s13 = scalar_lea.sflag [#allocation7], 1
    %14 = vsyncpa %s13, 0
    %15 = vsyncpa [#allocation10], 0
    %16 = vsyncpa [#allocation5], 0
    %s17 = scalar_lea.sflag [#allocation5], 1
    %18 = vsyncpa %s17, 0
    loop: start=0, step=1, limit=4
    $region2: #{tpu_custom_call.1} parent=1 // loop_pre_header
      _
    $region3: #{tpu_custom_call.1} parent=1 // loop_header
      %s20 = sphi 0, %s24
      %p21 = scmp.ge.s32.totalorder %s20, 4
      %s30 = sphi 0, %s32
      %s33 = sphi 0, %s30
      %s34 = sphi 0, %s33
      %s50 = sphi 0, %s34
      %s56 = sphi 0, %s58
      %s59 = sphi 0, %s56
      %s60 = sphi 0, %s59
      %s76 = sphi 0, %s60
      %s80 = sphi 0, %s80
      %s82 = sphi 0, %s80
      %s83 = sphi 0, %s82
      %s97 = sphi 0, %s83
      %s101 = sphi 0, %s101
      %s103 = sphi 0, %s101
      %s104 = sphi 0, %s103
      %s118 = sphi 0, %s104
      %s124 = sphi 0, %s126
      %s127 = sphi 0, %s124
      %s128 = sphi 0, %s127
      %s144 = sphi 0, %s128
    $region4: #{tpu_custom_call.1} parent=1 // loop_header_branch
      %23 = sbr.rel (%p21) target = $region8
    $region5: #{tpu_custom_call.1} parent=1 // loop_body
      %s25 = ssub.s32 %s20, 1
      %s26 = ssub.s32 %s20, 2
      %s27 = sadd.s32 %s20, 1
      %s28 = ssub.s32 %s20, %s27
      %p29 = scmp.eq.s32.totalorder %s28, 0
      %s31 = sadd.s32 %s30, 1
      %s32 = scalar_select %p29, %s30, %s31
      %p35 = pneg %p29
      %p36 = scmp.eq.s32.totalorder %s20, 1
      %p37 = por %p35, %p36
      %p38 = scmp.ne.s32.totalorder %s30, %s33
      %p39 = scmp.eq.s32.totalorder %s20, 0
      %p40 = por %p38, %p39
      %p41 = scmp.ne.s32.totalorder %s30, %s33
      %p42 = scmp.eq.s32.totalorder %s25, 1
      %p43 = por %p41, %p42
      %p44 = scmp.ne.s32.totalorder %s33, %s34
      %p45 = scmp.eq.s32.totalorder %s25, 0
      %p46 = por %p44, %p45
      %p47 = scmp.ne.s32.totalorder %s33, %s34
      %p48 = scmp.eq.s32.totalorder %s26, 1
      %p49 = por %p47, %p48
      %p51 = scmp.ne.s32.totalorder %s34, %s50
      %p52 = scmp.eq.s32.totalorder %s26, 0
      %p53 = por %p51, %p52
      %s54 = ssub.s32 %s20, %s27
      %p55 = scmp.eq.s32.totalorder %s54, 0
      %s57 = sadd.s32 %s56, 1
      %s58 = scalar_select %p55, %s56, %s57
      %p61 = pneg %p55
      %p62 = scmp.eq.s32.totalorder %s20, 1
      %p63 = por %p61, %p62
      %p64 = scmp.ne.s32.totalorder %s56, %s59
      %p65 = scmp.eq.s32.totalorder %s20, 0
      %p66 = por %p64, %p65
      %p67 = scmp.ne.s32.totalorder %s56, %s59
      %p68 = scmp.eq.s32.totalorder %s25, 1
      %p69 = por %p67, %p68
      %p70 = scmp.ne.s32.totalorder %s59, %s60
      %p71 = scmp.eq.s32.totalorder %s25, 0
      %p72 = por %p70, %p71
      %p73 = scmp.ne.s32.totalorder %s59, %s60
      %p74 = scmp.eq.s32.totalorder %s26, 1
      %p75 = por %p73, %p74
      %p77 = scmp.ne.s32.totalorder %s60, %s76
      %p78 = scmp.eq.s32.totalorder %s26, 0
      %p79 = por %p77, %p78
      %s81 = sadd.s32 %s80, 1
      %p84 = scmp.eq.s32.totalorder %s20, 1
      %p85 = scmp.ne.s32.totalorder %s80, %s82
      %p86 = scmp.eq.s32.totalorder %s20, 0
      %p87 = por %p85, %p86
      %p88 = scmp.ne.s32.totalorder %s80, %s82
      %p89 = scmp.eq.s32.totalorder %s25, 1
      %p90 = por %p88, %p89
      %p91 = scmp.ne.s32.totalorder %s82, %s83
      %p92 = scmp.eq.s32.totalorder %s25, 0
      %p93 = por %p91, %p92
      %p94 = scmp.ne.s32.totalorder %s82, %s83
      %p95 = scmp.eq.s32.totalorder %s26, 1
      %p96 = por %p94, %p95
      %p98 = scmp.ne.s32.totalorder %s83, %s97
      %p99 = scmp.eq.s32.totalorder %s26, 0
      %p100 = por %p98, %p99
      %s102 = sadd.s32 %s101, 1
      %p105 = scmp.eq.s32.totalorder %s20, 1
      %p106 = scmp.ne.s32.totalorder %s101, %s103
      %p107 = scmp.eq.s32.totalorder %s20, 0
      %p108 = por %p106, %p107
      %p109 = scmp.ne.s32.totalorder %s101, %s103
      %p110 = scmp.eq.s32.totalorder %s25, 1
      %p111 = por %p109, %p110
      %p112 = scmp.ne.s32.totalorder %s103, %s104
      %p113 = scmp.eq.s32.totalorder %s25, 0
      %p114 = por %p112, %p113
      %p115 = scmp.ne.s32.totalorder %s103, %s104
      %p116 = scmp.eq.s32.totalorder %s26, 1
      %p117 = por %p115, %p116
      %p119 = scmp.ne.s32.totalorder %s104, %s118
      %p120 = scmp.eq.s32.totalorder %s26, 0
      %p121 = por %p119, %p120
      %s122 = ssub.s32 %s20, %s27
      %p123 = scmp.eq.s32.totalorder %s122, 0
      %s125 = sadd.s32 %s124, 1
      %s126 = scalar_select %p123, %s124, %s125
      %p129 = pneg %p123
      %p130 = scmp.eq.s32.totalorder %s20, 1
      %p131 = por %p129, %p130
      %p132 = scmp.ne.s32.totalorder %s124, %s127
      %p133 = scmp.eq.s32.totalorder %s20, 0
      %p134 = por %p132, %p133
      %p135 = scmp.ne.s32.totalorder %s124, %s127
      %p136 = scmp.eq.s32.totalorder %s25, 1
      %p137 = por %p135, %p136
      %p138 = scmp.ne.s32.totalorder %s127, %s128
      %p139 = scmp.eq.s32.totalorder %s25, 0
      %p140 = por %p138, %p139
      %p141 = scmp.ne.s32.totalorder %s127, %s128
      %p142 = scmp.eq.s32.totalorder %s26, 1
      %p143 = por %p141, %p142
      %p145 = scmp.ne.s32.totalorder %s128, %s144
      %p146 = scmp.eq.s32.totalorder %s26, 0
      %p147 = por %p145, %p146
      %p148 = scmp.le.s32.totalorder 1, %s20
      %p149 = scmp.lt.s32.totalorder %s20, 3
      %p150 = pnand %p148, %p149
      %p151 = pneg %p150
      // Predicated region
      $region9: #{tpu_custom_call.1} parent=5 // pred_check
        _
      $region10: #{tpu_custom_call.1} parent=5 // pred_check_branch
        %153 = sbr.rel (%p150) target = $region12
      $region11: #{tpu_custom_call.1} parent=5 // pred_region
        %s154 = ssub.s32 %s20, 1
        // Predicated region
        $region13: #{tpu_custom_call.1} parent=11 // pred_check
          %p155 = pneg %p93
        $region14: #{tpu_custom_call.1} parent=11 // pred_check_branch
          %157 = sbr.rel (%p155) target = $region16
        $region15: #{tpu_custom_call.1} parent=11 // pred_region
          %s159 = ssub.s32 2048, 2048
          %160 = vsyncadd [#allocation7], %s159
          %s161 = sshll.u32 [#allocation8], 4
          %s162 = int_to_ptr.vmem [resolvable:$true] %s161
          %167 = dma.hbm_to_vmem [thread:$0]  %s2, 2048, %s162, [#allocation7], 128, 128, 8
        $region16: #{tpu_custom_call.1} parent=11 // pred_fallthru
          _
        // Predicated region
        $region17: #{tpu_custom_call.1} parent=11 // pred_check
          %p168 = pneg %p114
        $region18: #{tpu_custom_call.1} parent=11 // pred_check_branch
          %170 = sbr.rel (%p168) target = $region20
        $region19: #{tpu_custom_call.1} parent=11 // pred_region
          %s172 = ssub.s32 4096, 4096
          %173 = vsyncadd [#allocation10], %s172
          %s174 = sshll.u32 [#allocation9], 4
          %s175 = int_to_ptr.vmem [resolvable:$true] %s174
          %180 = dma.hbm_to_vmem [thread:$0]  %s3, 4096, %s175, [#allocation10], 128, 128, 8
        $region20: #{tpu_custom_call.1} parent=11 // pred_fallthru
          _
      $region12: #{tpu_custom_call.1} parent=5 // pred_fallthru
        _
      %p181 = scmp.lt.s32.totalorder %s20, 2
      // Predicated region
      $region21: #{tpu_custom_call.1} parent=5 // pred_check
        %p182 = pneg %p181
      $region22: #{tpu_custom_call.1} parent=5 // pred_check_branch
        %184 = sbr.rel (%p182) target = $region24
      $region23: #{tpu_custom_call.1} parent=5 // pred_region
        // Predicated region
        $region25: #{tpu_custom_call.1} parent=23 // pred_check
          %p185 = pneg %p40
        $region26: #{tpu_custom_call.1} parent=23 // pred_check_branch
          %187 = sbr.rel (%p185) target = $region28
        $region27: #{tpu_custom_call.1} parent=23 // pred_region
          %s188 = sand.u32 %s30, 1
          %s189 = scalar_lea.sflag [#allocation4], %s188
          %s190 = sand.u32 %s30, 1
          %s191 = smul.addr %s190, 64
          %s192 = scalar_lea.vmem [#allocation3], %s191
          %s193 = smul.u32 8, %s20
          %s195 = ssub.s32 1024, 1024
          %196 = vsyncadd %s189, %s195
          %s197 = smul.addr %s193, 128
          %s198 = scalar_lea.hbm %s0, %s197
          %s199 = sshll.u32 %s192, 4
          %s200 = int_to_ptr.vmem [resolvable:$true] %s199
          %205 = dma.hbm_to_vmem [thread:$0]  %s198, 1024, %s200, %s189, 128, 128, 8
        $region28: #{tpu_custom_call.1} parent=23 // pred_fallthru
          _
        // Predicated region
        $region29: #{tpu_custom_call.1} parent=23 // pred_check
          %p206 = pneg %p66
        $region30: #{tpu_custom_call.1} parent=23 // pred_check_branch
          %208 = sbr.rel (%p206) target = $region32
        $region31: #{tpu_custom_call.1} parent=23 // pred_region
          %s209 = sand.u32 %s20, 1
          %s210 = scalar_lea.sflag [#allocation7], %s209
          %s211 = sand.u32 %s56, 1
          %s212 = smul.addr %s211, 64
          %s213 = scalar_lea.vmem [#allocation6], %s212
          %s214 = smul.u32 8, %s20
          %s216 = ssub.s32 1024, 1024
          %217 = vsyncadd %s210, %s216
          %s218 = smul.addr %s214, 128
          %s219 = scalar_lea.hbm %s1, %s218
          %s220 = sshll.u32 %s213, 4
          %s221 = int_to_ptr.vmem [resolvable:$true] %s220
          %226 = dma.hbm_to_vmem [thread:$0]  %s219, 1024, %s221, %s210, 128, 128, 8
        $region32: #{tpu_custom_call.1} parent=23 // pred_fallthru
          _
      $region24: #{tpu_custom_call.1} parent=5 // pred_fallthru
        _
      %p227 = scmp.le.s32.totalorder 1, %s20
      %p228 = scmp.lt.s32.totalorder %s20, 3
      %p229 = pnand %p227, %p228
      %p230 = pneg %p229
      // Predicated region
      $region33: #{tpu_custom_call.1} parent=5 // pred_check
        _
      $region34: #{tpu_custom_call.1} parent=5 // pred_check_branch
        %232 = sbr.rel (%p229) target = $region36
      $region35: #{tpu_custom_call.1} parent=5 // pred_region
        %s233 = ssub.s32 %s20, 1
        %s234 = sand.u32 %s33, 1
        %s235 = scalar_lea.sflag [#allocation4], %s234
        %s236 = sand.u32 %s33, 1
        %s237 = smul.addr %s236, 64
        %s238 = scalar_lea.vmem [#allocation3], %s237
        // Predicated region
        $region37: #{tpu_custom_call.1} parent=35 // pred_check
          %p239 = pneg %p46
        $region38: #{tpu_custom_call.1} parent=35 // pred_check_branch
          %241 = sbr.rel (%p239) target = $region40
        $region39: #{tpu_custom_call.1} parent=35 // pred_region
          %242 = dma.done %s235, 1024
        $region40: #{tpu_custom_call.1} parent=35 // pred_fallthru
          _
        %s243 = sand.u32 %s25, 1
        %s244 = scalar_lea.sflag [#allocation7], %s243
        %s245 = sand.u32 %s59, 1
        %s246 = smul.addr %s245, 64
        %s247 = scalar_lea.vmem [#allocation6], %s246
        // Predicated region
        $region41: #{tpu_custom_call.1} parent=35 // pred_check
          %p248 = pneg %p72
        $region42: #{tpu_custom_call.1} parent=35 // pred_check_branch
          %250 = sbr.rel (%p248) target = $region44
        $region43: #{tpu_custom_call.1} parent=35 // pred_region
          %251 = dma.done %s244, 1024
        $region44: #{tpu_custom_call.1} parent=35 // pred_fallthru
          _
        // Predicated region
        $region45: #{tpu_custom_call.1} parent=35 // pred_check
          %p252 = pneg %p93
        $region46: #{tpu_custom_call.1} parent=35 // pred_check_branch
          %254 = sbr.rel (%p252) target = $region48
        $region47: #{tpu_custom_call.1} parent=35 // pred_region
          %255 = dma.done [#allocation7], 2048
        $region48: #{tpu_custom_call.1} parent=35 // pred_fallthru
          _
        // Predicated region
        $region49: #{tpu_custom_call.1} parent=35 // pred_check
          %p256 = pneg %p114
        $region50: #{tpu_custom_call.1} parent=35 // pred_check_branch
          %258 = sbr.rel (%p256) target = $region52
        $region51: #{tpu_custom_call.1} parent=35 // pred_region
          %259 = dma.done [#allocation10], 4096
        $region52: #{tpu_custom_call.1} parent=35 // pred_fallthru
          _
        %s260 = sand.u32 %s33, 1
        %s261 = scalar_lea.sflag [#allocation4], %s260
        %s262 = sand.u32 %s33, 1
        %s263 = smul.addr %s262, 64
        %s264 = scalar_lea.vmem [#allocation3], %s263
        %p265 = pneg %p46
        %p266 = pneg %p43
        %s267 = sand.u32 %s25, 1
        %s268 = scalar_lea.sflag [#allocation7], %s267
        %s269 = sand.u32 %s59, 1
        %s270 = smul.addr %s269, 64
        %s271 = scalar_lea.vmem [#allocation6], %s270
        %p272 = pneg %p72
        %p273 = pneg %p69
        %p274 = pneg %p93
        %p275 = pneg %p90
        %p276 = pneg %p114
        %p277 = pneg %p111
        %p278 = pneg %p140
        %p279 = pneg %p137
        %s280 = sand.u32 %s127, 1
        %s281 = scalar_lea.sflag [#allocation5], %s280
        %s282 = sand.u32 %s127, 1
        %s283 = smul.addr %s282, 64
        %s284 = scalar_lea.vmem [#allocation11], %s283
        %s285 = smul.u32 8, %s25
        %s286 = smul.u32 8, %s25
        %s287 = smul.u32 8, %s25
        %v288 = vld [vmem:[%s238] sm:$0xff]
        %v289 = vld [vmem:[%s238 + $0x8] sm:$0xff]
        %v290 = vld [vmem:[%s238 + $0x10] sm:$0xff]
        %v291 = vld [vmem:[%s238 + $0x18] sm:$0xff]
        %v292 = vld [vmem:[%s238 + $0x20] sm:$0xff]
        %v293 = vld [vmem:[%s238 + $0x28] sm:$0xff]
        %v294 = vld [vmem:[%s238 + $0x30] sm:$0xff]
        %v295 = vld [vmem:[%s238 + $0x38] sm:$0xff]
        %v296 = vld [vmem:[%s247] sm:$0xff]
        %v297 = vld [vmem:[%s247 + $0x8] sm:$0xff]
        %v298 = vld [vmem:[%s247 + $0x10] sm:$0xff]
        %v299 = vld [vmem:[%s247 + $0x18] sm:$0xff]
        %v300 = vld [vmem:[%s247 + $0x20] sm:$0xff]
        %v301 = vld [vmem:[%s247 + $0x28] sm:$0xff]
        %v302 = vld [vmem:[%s247 + $0x30] sm:$0xff]
        %v303 = vld [vmem:[%s247 + $0x38] sm:$0xff]
        %v304 = vld [vmem:[#allocation8] sm:$0xff]
        %v305 = vld [vmem:[#allocation8 + $0x8] sm:$0xff]
        %v306 = vld [vmem:[#allocation8 + $0x10] sm:$0xff]
        %v307 = vld [vmem:[#allocation8 + $0x18] sm:$0xff]
        %v308 = vld [vmem:[#allocation8 + $0x20] sm:$0xff]
        %v309 = vld [vmem:[#allocation8 + $0x28] sm:$0xff]
        %v310 = vld [vmem:[#allocation8 + $0x30] sm:$0xff]
        %v311 = vld [vmem:[#allocation8 + $0x38] sm:$0xff]
        %v312 = vld [vmem:[#allocation8 + $0x40] sm:$0xff]
        %v313 = vld [vmem:[#allocation8 + $0x48] sm:$0xff]
        %v314 = vld [vmem:[#allocation8 + $0x50] sm:$0xff]
        %v315 = vld [vmem:[#allocation8 + $0x58] sm:$0xff]
        %v316 = vld [vmem:[#allocation8 + $0x60] sm:$0xff]
        %v317 = vld [vmem:[#allocation8 + $0x68] sm:$0xff]
        %v318 = vld [vmem:[#allocation8 + $0x70] sm:$0xff]
        %v319 = vld [vmem:[#allocation8 + $0x78] sm:$0xff]
        %320 = vmatprep.subr.mxu0 0.0
        %321 = vmatpush1.msra.mxu0 %v304
        %322 = vmatprep.subr.mxu0 0.0
        %323 = vmatpush1.msra.mxu0 %v305
        %324 = vmatprep.subr.mxu0 0.0
        %325 = vmatpush1.msra.mxu0 %v306
        %326 = vmatprep.subr.mxu0 0.0
        %327 = vmatpush1.msra.mxu0 %v307
        %328 = vmatprep.subr.mxu0 0.0
        %329 = vmatpush1.msra.mxu0 %v308
        %330 = vmatprep.subr.mxu0 0.0
        %331 = vmatpush1.msra.mxu0 %v309
        %332 = vmatprep.subr.mxu0 0.0
        %333 = vmatpush1.msra.mxu0 %v310
        %334 = vmatprep.subr.mxu0 0.0
        %335 = vmatpush1.msra.mxu0 %v311
        %336 = vmatprep.subr.mxu0 0.0
        %337 = vmatpush1.msra.mxu0 %v312
        %338 = vmatprep.subr.mxu0 0.0
        %339 = vmatpush1.msra.mxu0 %v313
        %340 = vmatprep.subr.mxu0 0.0
        %341 = vmatpush1.msra.mxu0 %v314
        %342 = vmatprep.subr.mxu0 0.0
        %343 = vmatpush1.msra.mxu0 %v315
        %344 = vmatprep.subr.mxu0 0.0
        %345 = vmatpush1.msra.mxu0 %v316
        %346 = vmatprep.subr.mxu0 0.0
        %347 = vmatpush1.msra.mxu0 %v317
        %348 = vmatprep.subr.mxu0 0.0
        %349 = vmatpush1.msra.mxu0 %v318
        %350 = vmatprep.subr.mxu0 0.0
        %351 = vmatpush1.msra.mxu0 %v319
        %352 = vmatprep.subr.mxu0 0.0
        %353 = vmatpush1.msra.mxu0 0.0
        %354 = vmatprep.subr.mxu0 0.0
        %355 = vmatpush1.msra.mxu0 0.0
        %356 = vmatprep.subr.mxu0 0.0
        %357 = vmatpush1.msra.mxu0 0.0
        %358 = vmatprep.subr.mxu0 0.0
        %359 = vmatpush1.msra.mxu0 0.0
        %360 = vmatprep.subr.mxu0 0.0
        %361 = vmatpush1.msra.mxu0 0.0
        %362 = vmatprep.subr.mxu0 0.0
        %363 = vmatpush1.msra.mxu0 0.0
        %364 = vmatprep.subr.mxu0 0.0
        %365 = vmatpush1.msra.mxu0 0.0
        %366 = vmatprep.subr.mxu0 0.0
        %367 = vmatpush1.msra.mxu0 0.0
        %368 = vmatprep.subr.mxu0 0.0
        %369 = vmatpush1.msra.mxu0 0.0
        %370 = vmatprep.subr.mxu0 0.0
        %371 = vmatpush1.msra.mxu0 0.0
        %372 = vmatprep.subr.mxu0 0.0
        %373 = vmatpush1.msra.mxu0 0.0
        %374 = vmatprep.subr.mxu0 0.0
        %375 = vmatpush1.msra.mxu0 0.0
        %376 = vmatprep.subr.mxu0 0.0
        %377 = vmatpush1.msra.mxu0 0.0
        %378 = vmatprep.subr.mxu0 0.0
        %379 = vmatpush1.msra.mxu0 0.0
        %380 = vmatprep.subr.mxu0 0.0
        %381 = vmatpush1.msra.mxu0 0.0
        %382 = vmatprep.subr.mxu0 0.0
        %383 = vmatpush1.msra.mxu0 0.0
        %384 = vmatprep.mubr.f32.mxu0 0.0
        %385 = vmatmul.mubr.f32.gmra.mrb[0].mxu0 %v288
        %v386 = vpop.f32.mrb[0].mxu0
        %v387 = vadd.f32 0.0, %v386
        %v388 = vpop.f32.mrb[0].mxu0
        %389 = vmatprep.mubr.f32.mxu0 0.0
        %390 = vmatmul.mubr.f32.gmra.mrb[0].mxu0 %v289
        %v391 = vpop.f32.mrb[0].mxu0
        %v392 = vadd.f32 0.0, %v391
        %v393 = vpop.f32.mrb[0].mxu0
        %394 = vmatprep.mubr.f32.mxu0 0.0
        %395 = vmatmul.mubr.f32.gmra.mrb[0].mxu0 %v290
        %v396 = vpop.f32.mrb[0].mxu0
        %v397 = vadd.f32 0.0, %v396
        %v398 = vpop.f32.mrb[0].mxu0
        %399 = vmatprep.mubr.f32.mxu0 0.0
        %400 = vmatmul.mubr.f32.gmra.mrb[0].mxu0 %v291
        %v401 = vpop.f32.mrb[0].mxu0
        %v402 = vadd.f32 0.0, %v401
        %v403 = vpop.f32.mrb[0].mxu0
        %404 = vmatprep.mubr.f32.mxu0 0.0
        %405 = vmatmul.mubr.f32.gmra.mrb[0].mxu0 %v292
        %v406 = vpop.f32.mrb[0].mxu0
        %v407 = vadd.f32 0.0, %v406
        %v408 = vpop.f32.mrb[0].mxu0
        %409 = vmatprep.mubr.f32.mxu0 0.0
        %410 = vmatmul.mubr.f32.gmra.mrb[0].mxu0 %v293
        %v411 = vpop.f32.mrb[0].mxu0
        %v412 = vadd.f32 0.0, %v411
        %v413 = vpop.f32.mrb[0].mxu0
        %414 = vmatprep.mubr.f32.mxu0 0.0
        %415 = vmatmul.mubr.f32.gmra.mrb[0].mxu0 %v294
        %v416 = vpop.f32.mrb[0].mxu0
        %v417 = vadd.f32 0.0, %v416
        %v418 = vpop.f32.mrb[0].mxu0
        %419 = vmatprep.mubr.f32.mxu0 0.0
        %420 = vmatmul.mubr.f32.gmra.mrb[0].mxu0 %v295
        %v421 = vpop.f32.mrb[0].mxu0
        %v422 = vadd.f32 0.0, %v421
        %v423 = vpop.f32.mrb[0].mxu0
        %424 = vdwg.mxu0
        %425 = vmatprep.subr.mxu0 0.0
        %426 = vmatpush1.xpose.msra.mxu0 %v296
        %427 = vmatprep.subr.mxu0 0.0
        %428 = vmatpush1.xpose.msra.mxu0 0.0
        %429 = vmatprep.subr.mxu0 0.0
        %430 = vmatpush1.xpose.msra.mxu0 0.0
        %431 = vmatprep.subr.mxu0 0.0
        %432 = vmatpush1.xpose.msra.mxu0 0.0
        %433 = vmatprep.subr.mxu0 0.0
        %434 = vmatpush1.xpose.msra.mxu0 0.0
        %435 = vmatprep.subr.mxu0 0.0
        %436 = vmatpush1.xpose.msra.mxu0 0.0
        %437 = vmatprep.subr.mxu0 0.0
        %438 = vmatpush1.xpose.msra.mxu0 0.0
        %439 = vmatprep.subr.mxu0 0.0
        %440 = vmatpush1.xpose.msra.mxu0 0.0
        %441 = vmatprep.subr.mxu0 0.0
        %442 = vmatpush1.xpose.msra.mxu0 0.0
        %443 = vmatprep.subr.mxu0 0.0
        %444 = vmatpush1.xpose.msra.mxu0 0.0
        %445 = vmatprep.subr.mxu0 0.0
        %446 = vmatpush1.xpose.msra.mxu0 0.0
        %447 = vmatprep.subr.mxu0 0.0
        %448 = vmatpush1.xpose.msra.mxu0 0.0
        %449 = vmatprep.subr.mxu0 0.0
        %450 = vmatpush1.xpose.msra.mxu0 0.0
        %451 = vmatprep.subr.mxu0 0.0
        %452 = vmatpush1.xpose.msra.mxu0 0.0
        %453 = vmatprep.subr.mxu0 0.0
        %454 = vmatpush1.xpose.msra.mxu0 0.0
        %455 = vmatprep.subr.mxu0 0.0
        %456 = vmatpush1.xpose.msra.mxu0 0.0
        %457 = vmatprep.subr.mxu0 0.0
        %458 = vmatpush1.xpose.msra.mxu0 0.0
        %459 = vmatprep.subr.mxu0 0.0
        %460 = vmatpush1.xpose.msra.mxu0 0.0
        %461 = vmatprep.subr.mxu0 0.0
        %462 = vmatpush1.xpose.msra.mxu0 0.0
        %463 = vmatprep.subr.mxu0 0.0
        %464 = vmatpush1.xpose.msra.mxu0 0.0
        %465 = vmatprep.subr.mxu0 0.0
        %466 = vmatpush1.xpose.msra.mxu0 0.0
        %467 = vmatprep.subr.mxu0 0.0
        %468 = vmatpush1.xpose.msra.mxu0 0.0
        %469 = vmatprep.subr.mxu0 0.0
        %470 = vmatpush1.xpose.msra.mxu0 0.0
        %471 = vmatprep.subr.mxu0 0.0
        %472 = vmatpush1.xpose.msra.mxu0 0.0
        %473 = vmatprep.subr.mxu0 0.0
        %474 = vmatpush1.xpose.msra.mxu0 0.0
        %475 = vmatprep.subr.mxu0 0.0
        %476 = vmatpush1.xpose.msra.mxu0 0.0
        %477 = vmatprep.subr.mxu0 0.0
        %478 = vmatpush1.xpose.msra.mxu0 0.0
        %479 = vmatprep.subr.mxu0 0.0
        %480 = vmatpush1.xpose.msra.mxu0 0.0
        %481 = vmatprep.subr.mxu0 0.0
        %482 = vmatpush1.xpose.msra.mxu0 0.0
        %483 = vmatprep.subr.mxu0 0.0
        %484 = vmatpush1.xpose.msra.mxu0 0.0
        %485 = vmatprep.subr.mxu0 0.0
        %486 = vmatpush1.xpose.msra.mxu0 0.0
        %487 = vmatprep.subr.mxu0 0.0
        %488 = vmatpush1.xpose.msra.mxu0 0.0
        %489 = vmatprep.mubr.f32.mxu0 0.0
        %490 = vmatmul.mubr.f32.gmra.mrb[0].mxu0 %v387
        %v491 = vpop.f32.mrb[0].mxu0
        %v492 = vadd.f32 0.0, %v491
        %v493 = vpop.f32.mrb[0].mxu0
        %494 = vdwg.mxu0
        %495 = vmatprep.subr.mxu0 0.0
        %496 = vmatpush1.xpose.msra.mxu0 %v297
        %497 = vmatprep.subr.mxu0 0.0
        %498 = vmatpush1.xpose.msra.mxu0 0.0
        %499 = vmatprep.subr.mxu0 0.0
        %500 = vmatpush1.xpose.msra.mxu0 0.0
        %501 = vmatprep.subr.mxu0 0.0
        %502 = vmatpush1.xpose.msra.mxu0 0.0
        %503 = vmatprep.subr.mxu0 0.0
        %504 = vmatpush1.xpose.msra.mxu0 0.0
        %505 = vmatprep.subr.mxu0 0.0
        %506 = vmatpush1.xpose.msra.mxu0 0.0
        %507 = vmatprep.subr.mxu0 0.0
        %508 = vmatpush1.xpose.msra.mxu0 0.0
        %509 = vmatprep.subr.mxu0 0.0
        %510 = vmatpush1.xpose.msra.mxu0 0.0
        %511 = vmatprep.subr.mxu0 0.0
        %512 = vmatpush1.xpose.msra.mxu0 0.0
        %513 = vmatprep.subr.mxu0 0.0
        %514 = vmatpush1.xpose.msra.mxu0 0.0
        %515 = vmatprep.subr.mxu0 0.0
        %516 = vmatpush1.xpose.msra.mxu0 0.0
        %517 = vmatprep.subr.mxu0 0.0
        %518 = vmatpush1.xpose.msra.mxu0 0.0
        %519 = vmatprep.subr.mxu0 0.0
        %520 = vmatpush1.xpose.msra.mxu0 0.0
        %521 = vmatprep.subr.mxu0 0.0
        %522 = vmatpush1.xpose.msra.mxu0 0.0
        %523 = vmatprep.subr.mxu0 0.0
        %524 = vmatpush1.xpose.msra.mxu0 0.0
        %525 = vmatprep.subr.mxu0 0.0
        %526 = vmatpush1.xpose.msra.mxu0 0.0
        %527 = vmatprep.subr.mxu0 0.0
        %528 = vmatpush1.xpose.msra.mxu0 0.0
        %529 = vmatprep.subr.mxu0 0.0
        %530 = vmatpush1.xpose.msra.mxu0 0.0
        %531 = vmatprep.subr.mxu0 0.0
        %532 = vmatpush1.xpose.msra.mxu0 0.0
        %533 = vmatprep.subr.mxu0 0.0
        %534 = vmatpush1.xpose.msra.mxu0 0.0
        %535 = vmatprep.subr.mxu0 0.0
        %536 = vmatpush1.xpose.msra.mxu0 0.0
        %537 = vmatprep.subr.mxu0 0.0
        %538 = vmatpush1.xpose.msra.mxu0 0.0
        %539 = vmatprep.subr.mxu0 0.0
        %540 = vmatpush1.xpose.msra.mxu0 0.0
        %541 = vmatprep.subr.mxu0 0.0
        %542 = vmatpush1.xpose.msra.mxu0 0.0
        %543 = vmatprep.subr.mxu0 0.0
        %544 = vmatpush1.xpose.msra.mxu0 0.0
        %545 = vmatprep.subr.mxu0 0.0
        %546 = vmatpush1.xpose.msra.mxu0 0.0
        %547 = vmatprep.subr.mxu0 0.0
        %548 = vmatpush1.xpose.msra.mxu0 0.0
        %549 = vmatprep.subr.mxu0 0.0
        %550 = vmatpush1.xpose.msra.mxu0 0.0
        %551 = vmatprep.subr.mxu0 0.0
        %552 = vmatpush1.xpose.msra.mxu0 0.0
        %553 = vmatprep.subr.mxu0 0.0
        %554 = vmatpush1.xpose.msra.mxu0 0.0
        %555 = vmatprep.subr.mxu0 0.0
        %556 = vmatpush1.xpose.msra.mxu0 0.0
        %557 = vmatprep.subr.mxu0 0.0
        %558 = vmatpush1.xpose.msra.mxu0 0.0
        %559 = vmatprep.mubr.f32.mxu0 0.0
        %560 = vmatmul.mubr.f32.gmra.mrb[0].mxu0 %v392
        %v561 = vpop.f32.mrb[0].mxu0
        %v562 = vadd.f32 0.0, %v561
        %v563 = vpop.f32.mrb[0].mxu0
        %564 = vdwg.mxu0
        %565 = vmatprep.subr.mxu0 0.0
        %566 = vmatpush1.xpose.msra.mxu0 %v298
        %567 = vmatprep.subr.mxu0 0.0
        %568 = vmatpush1.xpose.msra.mxu0 0.0
        %569 = vmatprep.subr.mxu0 0.0
        %570 = vmatpush1.xpose.msra.mxu0 0.0
        %571 = vmatprep.subr.mxu0 0.0
        %572 = vmatpush1.xpose.msra.mxu0 0.0
        %573 = vmatprep.subr.mxu0 0.0
        %574 = vmatpush1.xpose.msra.mxu0 0.0
        %575 = vmatprep.subr.mxu0 0.0
        %576 = vmatpush1.xpose.msra.mxu0 0.0
        %577 = vmatprep.subr.mxu0 0.0
        %578 = vmatpush1.xpose.msra.mxu0 0.0
        %579 = vmatprep.subr.mxu0 0.0
        %580 = vmatpush1.xpose.msra.mxu0 0.0
        %581 = vmatprep.subr.mxu0 0.0
        %582 = vmatpush1.xpose.msra.mxu0 0.0
        %583 = vmatprep.subr.mxu0 0.0
        %584 = vmatpush1.xpose.msra.mxu0 0.0
        %585 = vmatprep.subr.mxu0 0.0
        %586 = vmatpush1.xpose.msra.mxu0 0.0
        %587 = vmatprep.subr.mxu0 0.0
        %588 = vmatpush1.xpose.msra.mxu0 0.0
        %589 = vmatprep.subr.mxu0 0.0
        %590 = vmatpush1.xpose.msra.mxu0 0.0
        %591 = vmatprep.subr.mxu0 0.0
        %592 = vmatpush1.xpose.msra.mxu0 0.0
        %593 = vmatprep.subr.mxu0 0.0
        %594 = vmatpush1.xpose.msra.mxu0 0.0
        %595 = vmatprep.subr.mxu0 0.0
        %596 = vmatpush1.xpose.msra.mxu0 0.0
        %597 = vmatprep.subr.mxu0 0.0
        %598 = vmatpush1.xpose.msra.mxu0 0.0
        %599 = vmatprep.subr.mxu0 0.0
        %600 = vmatpush1.xpose.msra.mxu0 0.0
        %601 = vmatprep.subr.mxu0 0.0
        %602 = vmatpush1.xpose.msra.mxu0 0.0
        %603 = vmatprep.subr.mxu0 0.0
        %604 = vmatpush1.xpose.msra.mxu0 0.0
        %605 = vmatprep.subr.mxu0 0.0
        %606 = vmatpush1.xpose.msra.mxu0 0.0
        %607 = vmatprep.subr.mxu0 0.0
        %608 = vmatpush1.xpose.msra.mxu0 0.0
        %609 = vmatprep.subr.mxu0 0.0
        %610 = vmatpush1.xpose.msra.mxu0 0.0
        %611 = vmatprep.subr.mxu0 0.0
        %612 = vmatpush1.xpose.msra.mxu0 0.0
        %613 = vmatprep.subr.mxu0 0.0
        %614 = vmatpush1.xpose.msra.mxu0 0.0
        %615 = vmatprep.subr.mxu0 0.0
        %616 = vmatpush1.xpose.msra.mxu0 0.0
        %617 = vmatprep.subr.mxu0 0.0
        %618 = vmatpush1.xpose.msra.mxu0 0.0
        %619 = vmatprep.subr.mxu0 0.0
        %620 = vmatpush1.xpose.msra.mxu0 0.0
        %621 = vmatprep.subr.mxu0 0.0
        %622 = vmatpush1.xpose.msra.mxu0 0.0
        %623 = vmatprep.subr.mxu0 0.0
        %624 = vmatpush1.xpose.msra.mxu0 0.0
        %625 = vmatprep.subr.mxu0 0.0
        %626 = vmatpush1.xpose.msra.mxu0 0.0
        %627 = vmatprep.subr.mxu0 0.0
        %628 = vmatpush1.xpose.msra.mxu0 0.0
        %629 = vmatprep.mubr.f32.mxu0 0.0
        %630 = vmatmul.mubr.f32.gmra.mrb[0].mxu0 %v397
        %v631 = vpop.f32.mrb[0].mxu0
        %v632 = vadd.f32 0.0, %v631
        %v633 = vpop.f32.mrb[0].mxu0
        %634 = vdwg.mxu0
        %635 = vmatprep.subr.mxu0 0.0
        %636 = vmatpush1.xpose.msra.mxu0 %v299
        %637 = vmatprep.subr.mxu0 0.0
        %638 = vmatpush1.xpose.msra.mxu0 0.0
        %639 = vmatprep.subr.mxu0 0.0
        %640 = vmatpush1.xpose.msra.mxu0 0.0
        %641 = vmatprep.subr.mxu0 0.0
        %642 = vmatpush1.xpose.msra.mxu0 0.0
        %643 = vmatprep.subr.mxu0 0.0
        %644 = vmatpush1.xpose.msra.mxu0 0.0
        %645 = vmatprep.subr.mxu0 0.0
        %646 = vmatpush1.xpose.msra.mxu0 0.0
        %647 = vmatprep.subr.mxu0 0.0
        %648 = vmatpush1.xpose.msra.mxu0 0.0
        %649 = vmatprep.subr.mxu0 0.0
        %650 = vmatpush1.xpose.msra.mxu0 0.0
        %651 = vmatprep.subr.mxu0 0.0
        %652 = vmatpush1.xpose.msra.mxu0 0.0
        %653 = vmatprep.subr.mxu0 0.0
        %654 = vmatpush1.xpose.msra.mxu0 0.0
        %655 = vmatprep.subr.mxu0 0.0
        %656 = vmatpush1.xpose.msra.mxu0 0.0
        %657 = vmatprep.subr.mxu0 0.0
        %658 = vmatpush1.xpose.msra.mxu0 0.0
        %659 = vmatprep.subr.mxu0 0.0
        %660 = vmatpush1.xpose.msra.mxu0 0.0
        %661 = vmatprep.subr.mxu0 0.0
        %662 = vmatpush1.xpose.msra.mxu0 0.0
        %663 = vmatprep.subr.mxu0 0.0
        %664 = vmatpush1.xpose.msra.mxu0 0.0
        %665 = vmatprep.subr.mxu0 0.0
        %666 = vmatpush1.xpose.msra.mxu0 0.0
        %667 = vmatprep.subr.mxu0 0.0
        %668 = vmatpush1.xpose.msra.mxu0 0.0
        %669 = vmatprep.subr.mxu0 0.0
        %670 = vmatpush1.xpose.msra.mxu0 0.0
        %671 = vmatprep.subr.mxu0 0.0
        %672 = vmatpush1.xpose.msra.mxu0 0.0
        %673 = vmatprep.subr.mxu0 0.0
        %674 = vmatpush1.xpose.msra.mxu0 0.0
        %675 = vmatprep.subr.mxu0 0.0
        %676 = vmatpush1.xpose.msra.mxu0 0.0
        %677 = vmatprep.subr.mxu0 0.0
        %678 = vmatpush1.xpose.msra.mxu0 0.0
        %679 = vmatprep.subr.mxu0 0.0
        %680 = vmatpush1.xpose.msra.mxu0 0.0
        %681 = vmatprep.subr.mxu0 0.0
        %682 = vmatpush1.xpose.msra.mxu0 0.0
        %683 = vmatprep.subr.mxu0 0.0
        %684 = vmatpush1.xpose.msra.mxu0 0.0
        %685 = vmatprep.subr.mxu0 0.0
        %686 = vmatpush1.xpose.msra.mxu0 0.0
        %687 = vmatprep.subr.mxu0 0.0
        %688 = vmatpush1.xpose.msra.mxu0 0.0
        %689 = vmatprep.subr.mxu0 0.0
        %690 = vmatpush1.xpose.msra.mxu0 0.0
        %691 = vmatprep.subr.mxu0 0.0
        %692 = vmatpush1.xpose.msra.mxu0 0.0
        %693 = vmatprep.subr.mxu0 0.0
        %694 = vmatpush1.xpose.msra.mxu0 0.0
        %695 = vmatprep.subr.mxu0 0.0
        %696 = vmatpush1.xpose.msra.mxu0 0.0
        %697 = vmatprep.subr.mxu0 0.0
        %698 = vmatpush1.xpose.msra.mxu0 0.0
        %699 = vmatprep.mubr.f32.mxu0 0.0
        %700 = vmatmul.mubr.f32.gmra.mrb[0].mxu0 %v402
        %v701 = vpop.f32.mrb[0].mxu0
        %v702 = vadd.f32 0.0, %v701
        %v703 = vpop.f32.mrb[0].mxu0
        %704 = vdwg.mxu0
        %705 = vmatprep.subr.mxu0 0.0
        %706 = vmatpush1.xpose.msra.mxu0 %v300
        %707 = vmatprep.subr.mxu0 0.0
        %708 = vmatpush1.xpose.msra.mxu0 0.0
        %709 = vmatprep.subr.mxu0 0.0
        %710 = vmatpush1.xpose.msra.mxu0 0.0
        %711 = vmatprep.subr.mxu0 0.0
        %712 = vmatpush1.xpose.msra.mxu0 0.0
        %713 = vmatprep.subr.mxu0 0.0
        %714 = vmatpush1.xpose.msra.mxu0 0.0
        %715 = vmatprep.subr.mxu0 0.0
        %716 = vmatpush1.xpose.msra.mxu0 0.0
        %717 = vmatprep.subr.mxu0 0.0
        %718 = vmatpush1.xpose.msra.mxu0 0.0
        %719 = vmatprep.subr.mxu0 0.0
        %720 = vmatpush1.xpose.msra.mxu0 0.0
        %721 = vmatprep.subr.mxu0 0.0
        %722 = vmatpush1.xpose.msra.mxu0 0.0
        %723 = vmatprep.subr.mxu0 0.0
        %724 = vmatpush1.xpose.msra.mxu0 0.0
        %725 = vmatprep.subr.mxu0 0.0
        %726 = vmatpush1.xpose.msra.mxu0 0.0
        %727 = vmatprep.subr.mxu0 0.0
        %728 = vmatpush1.xpose.msra.mxu0 0.0
        %729 = vmatprep.subr.mxu0 0.0
        %730 = vmatpush1.xpose.msra.mxu0 0.0
        %731 = vmatprep.subr.mxu0 0.0
        %732 = vmatpush1.xpose.msra.mxu0 0.0
        %733 = vmatprep.subr.mxu0 0.0
        %734 = vmatpush1.xpose.msra.mxu0 0.0
        %735 = vmatprep.subr.mxu0 0.0
        %736 = vmatpush1.xpose.msra.mxu0 0.0
        %737 = vmatprep.subr.mxu0 0.0
        %738 = vmatpush1.xpose.msra.mxu0 0.0
        %739 = vmatprep.subr.mxu0 0.0
        %740 = vmatpush1.xpose.msra.mxu0 0.0
        %741 = vmatprep.subr.mxu0 0.0
        %742 = vmatpush1.xpose.msra.mxu0 0.0
        %743 = vmatprep.subr.mxu0 0.0
        %744 = vmatpush1.xpose.msra.mxu0 0.0
        %745 = vmatprep.subr.mxu0 0.0
        %746 = vmatpush1.xpose.msra.mxu0 0.0
        %747 = vmatprep.subr.mxu0 0.0
        %748 = vmatpush1.xpose.msra.mxu0 0.0
        %749 = vmatprep.subr.mxu0 0.0
        %750 = vmatpush1.xpose.msra.mxu0 0.0
        %751 = vmatprep.subr.mxu0 0.0
        %752 = vmatpush1.xpose.msra.mxu0 0.0
        %753 = vmatprep.subr.mxu0 0.0
        %754 = vmatpush1.xpose.msra.mxu0 0.0
        %755 = vmatprep.subr.mxu0 0.0
        %756 = vmatpush1.xpose.msra.mxu0 0.0
        %757 = vmatprep.subr.mxu0 0.0
        %758 = vmatpush1.xpose.msra.mxu0 0.0
        %759 = vmatprep.subr.mxu0 0.0
        %760 = vmatpush1.xpose.msra.mxu0 0.0
        %761 = vmatprep.subr.mxu0 0.0
        %762 = vmatpush1.xpose.msra.mxu0 0.0
        %763 = vmatprep.subr.mxu0 0.0
        %764 = vmatpush1.xpose.msra.mxu0 0.0
        %765 = vmatprep.subr.mxu0 0.0
        %766 = vmatpush1.xpose.msra.mxu0 0.0
        %767 = vmatprep.subr.mxu0 0.0
        %768 = vmatpush1.xpose.msra.mxu0 0.0
        %769 = vmatprep.mubr.f32.mxu0 0.0
        %770 = vmatmul.mubr.f32.gmra.mrb[0].mxu0 %v407
        %v771 = vpop.f32.mrb[0].mxu0
        %v772 = vadd.f32 0.0, %v771
        %v773 = vpop.f32.mrb[0].mxu0
        %774 = vdwg.mxu0
        %775 = vmatprep.subr.mxu0 0.0
        %776 = vmatpush1.xpose.msra.mxu0 %v301
        %777 = vmatprep.subr.mxu0 0.0
        %778 = vmatpush1.xpose.msra.mxu0 0.0
        %779 = vmatprep.subr.mxu0 0.0
        %780 = vmatpush1.xpose.msra.mxu0 0.0
        %781 = vmatprep.subr.mxu0 0.0
        %782 = vmatpush1.xpose.msra.mxu0 0.0
        %783 = vmatprep.subr.mxu0 0.0
        %784 = vmatpush1.xpose.msra.mxu0 0.0
        %785 = vmatprep.subr.mxu0 0.0
        %786 = vmatpush1.xpose.msra.mxu0 0.0
        %787 = vmatprep.subr.mxu0 0.0
        %788 = vmatpush1.xpose.msra.mxu0 0.0
        %789 = vmatprep.subr.mxu0 0.0
        %790 = vmatpush1.xpose.msra.mxu0 0.0
        %791 = vmatprep.subr.mxu0 0.0
        %792 = vmatpush1.xpose.msra.mxu0 0.0
        %793 = vmatprep.subr.mxu0 0.0
        %794 = vmatpush1.xpose.msra.mxu0 0.0
        %795 = vmatprep.subr.mxu0 0.0
        %796 = vmatpush1.xpose.msra.mxu0 0.0
        %797 = vmatprep.subr.mxu0 0.0
        %798 = vmatpush1.xpose.msra.mxu0 0.0
        %799 = vmatprep.subr.mxu0 0.0
        %800 = vmatpush1.xpose.msra.mxu0 0.0
        %801 = vmatprep.subr.mxu0 0.0
        %802 = vmatpush1.xpose.msra.mxu0 0.0
        %803 = vmatprep.subr.mxu0 0.0
        %804 = vmatpush1.xpose.msra.mxu0 0.0
        %805 = vmatprep.subr.mxu0 0.0
        %806 = vmatpush1.xpose.msra.mxu0 0.0
        %807 = vmatprep.subr.mxu0 0.0
        %808 = vmatpush1.xpose.msra.mxu0 0.0
        %809 = vmatprep.subr.mxu0 0.0
        %810 = vmatpush1.xpose.msra.mxu0 0.0
        %811 = vmatprep.subr.mxu0 0.0
        %812 = vmatpush1.xpose.msra.mxu0 0.0
        %813 = vmatprep.subr.mxu0 0.0
        %814 = vmatpush1.xpose.msra.mxu0 0.0
        %815 = vmatprep.subr.mxu0 0.0
        %816 = vmatpush1.xpose.msra.mxu0 0.0
        %817 = vmatprep.subr.mxu0 0.0
        %818 = vmatpush1.xpose.msra.mxu0 0.0
        %819 = vmatprep.subr.mxu0 0.0
        %820 = vmatpush1.xpose.msra.mxu0 0.0
        %821 = vmatprep.subr.mxu0 0.0
        %822 = vmatpush1.xpose.msra.mxu0 0.0
        %823 = vmatprep.subr.mxu0 0.0
        %824 = vmatpush1.xpose.msra.mxu0 0.0
        %825 = vmatprep.subr.mxu0 0.0
        %826 = vmatpush1.xpose.msra.mxu0 0.0
        %827 = vmatprep.subr.mxu0 0.0
        %828 = vmatpush1.xpose.msra.mxu0 0.0
        %829 = vmatprep.subr.mxu0 0.0
        %830 = vmatpush1.xpose.msra.mxu0 0.0
        %831 = vmatprep.subr.mxu0 0.0
        %832 = vmatpush1.xpose.msra.mxu0 0.0
        %833 = vmatprep.subr.mxu0 0.0
        %834 = vmatpush1.xpose.msra.mxu0 0.0
        %835 = vmatprep.subr.mxu0 0.0
        %836 = vmatpush1.xpose.msra.mxu0 0.0
        %837 = vmatprep.subr.mxu0 0.0
        %838 = vmatpush1.xpose.msra.mxu0 0.0
        %839 = vmatprep.mubr.f32.mxu0 0.0
        %840 = vmatmul.mubr.f32.gmra.mrb[0].mxu0 %v412
        %v841 = vpop.f32.mrb[0].mxu0
        %v842 = vadd.f32 0.0, %v841
        %v843 = vpop.f32.mrb[0].mxu0
        %844 = vdwg.mxu0
        %845 = vmatprep.subr.mxu0 0.0
        %846 = vmatpush1.xpose.msra.mxu0 %v302
        %847 = vmatprep.subr.mxu0 0.0
        %848 = vmatpush1.xpose.msra.mxu0 0.0
        %849 = vmatprep.subr.mxu0 0.0
        %850 = vmatpush1.xpose.msra.mxu0 0.0
        %851 = vmatprep.subr.mxu0 0.0
        %852 = vmatpush1.xpose.msra.mxu0 0.0
        %853 = vmatprep.subr.mxu0 0.0
        %854 = vmatpush1.xpose.msra.mxu0 0.0
        %855 = vmatprep.subr.mxu0 0.0
        %856 = vmatpush1.xpose.msra.mxu0 0.0
        %857 = vmatprep.subr.mxu0 0.0
        %858 = vmatpush1.xpose.msra.mxu0 0.0
        %859 = vmatprep.subr.mxu0 0.0
        %860 = vmatpush1.xpose.msra.mxu0 0.0
        %861 = vmatprep.subr.mxu0 0.0
        %862 = vmatpush1.xpose.msra.mxu0 0.0
        %863 = vmatprep.subr.mxu0 0.0
        %864 = vmatpush1.xpose.msra.mxu0 0.0
        %865 = vmatprep.subr.mxu0 0.0
        %866 = vmatpush1.xpose.msra.mxu0 0.0
        %867 = vmatprep.subr.mxu0 0.0
        %868 = vmatpush1.xpose.msra.mxu0 0.0
        %869 = vmatprep.subr.mxu0 0.0
        %870 = vmatpush1.xpose.msra.mxu0 0.0
        %871 = vmatprep.subr.mxu0 0.0
        %872 = vmatpush1.xpose.msra.mxu0 0.0
        %873 = vmatprep.subr.mxu0 0.0
        %874 = vmatpush1.xpose.msra.mxu0 0.0
        %875 = vmatprep.subr.mxu0 0.0
        %876 = vmatpush1.xpose.msra.mxu0 0.0
        %877 = vmatprep.subr.mxu0 0.0
        %878 = vmatpush1.xpose.msra.mxu0 0.0
        %879 = vmatprep.subr.mxu0 0.0
        %880 = vmatpush1.xpose.msra.mxu0 0.0
        %881 = vmatprep.subr.mxu0 0.0
        %882 = vmatpush1.xpose.msra.mxu0 0.0
        %883 = vmatprep.subr.mxu0 0.0
        %884 = vmatpush1.xpose.msra.mxu0 0.0
        %885 = vmatprep.subr.mxu0 0.0
        %886 = vmatpush1.xpose.msra.mxu0 0.0
        %887 = vmatprep.subr.mxu0 0.0
        %888 = vmatpush1.xpose.msra.mxu0 0.0
        %889 = vmatprep.subr.mxu0 0.0
        %890 = vmatpush1.xpose.msra.mxu0 0.0
        %891 = vmatprep.subr.mxu0 0.0
        %892 = vmatpush1.xpose.msra.mxu0 0.0
        %893 = vmatprep.subr.mxu0 0.0
        %894 = vmatpush1.xpose.msra.mxu0 0.0
        %895 = vmatprep.subr.mxu0 0.0
        %896 = vmatpush1.xpose.msra.mxu0 0.0
        %897 = vmatprep.subr.mxu0 0.0
        %898 = vmatpush1.xpose.msra.mxu0 0.0
        %899 = vmatprep.subr.mxu0 0.0
        %900 = vmatpush1.xpose.msra.mxu0 0.0
        %901 = vmatprep.subr.mxu0 0.0
        %902 = vmatpush1.xpose.msra.mxu0 0.0
        %903 = vmatprep.subr.mxu0 0.0
        %904 = vmatpush1.xpose.msra.mxu0 0.0
        %905 = vmatprep.subr.mxu0 0.0
        %906 = vmatpush1.xpose.msra.mxu0 0.0
        %907 = vmatprep.subr.mxu0 0.0
        %908 = vmatpush1.xpose.msra.mxu0 0.0
        %909 = vmatprep.mubr.f32.mxu0 0.0
        %910 = vmatmul.mubr.f32.gmra.mrb[0].mxu0 %v417
        %v911 = vpop.f32.mrb[0].mxu0
        %v912 = vadd.f32 0.0, %v911
        %v913 = vpop.f32.mrb[0].mxu0
        %914 = vdwg.mxu0
        %915 = vmatprep.subr.mxu0 0.0
        %916 = vmatpush1.xpose.msra.mxu0 %v303
        %917 = vmatprep.subr.mxu0 0.0
        %918 = vmatpush1.xpose.msra.mxu0 0.0
        %919 = vmatprep.subr.mxu0 0.0
        %920 = vmatpush1.xpose.msra.mxu0 0.0
        %921 = vmatprep.subr.mxu0 0.0
        %922 = vmatpush1.xpose.msra.mxu0 0.0
        %923 = vmatprep.subr.mxu0 0.0
        %924 = vmatpush1.xpose.msra.mxu0 0.0
        %925 = vmatprep.subr.mxu0 0.0
        %926 = vmatpush1.xpose.msra.mxu0 0.0
        %927 = vmatprep.subr.mxu0 0.0
        %928 = vmatpush1.xpose.msra.mxu0 0.0
        %929 = vmatprep.subr.mxu0 0.0
        %930 = vmatpush1.xpose.msra.mxu0 0.0
        %931 = vmatprep.subr.mxu0 0.0
        %932 = vmatpush1.xpose.msra.mxu0 0.0
        %933 = vmatprep.subr.mxu0 0.0
        %934 = vmatpush1.xpose.msra.mxu0 0.0
        %935 = vmatprep.subr.mxu0 0.0
        %936 = vmatpush1.xpose.msra.mxu0 0.0
        %937 = vmatprep.subr.mxu0 0.0
        %938 = vmatpush1.xpose.msra.mxu0 0.0
        %939 = vmatprep.subr.mxu0 0.0
        %940 = vmatpush1.xpose.msra.mxu0 0.0
        %941 = vmatprep.subr.mxu0 0.0
        %942 = vmatpush1.xpose.msra.mxu0 0.0
        %943 = vmatprep.subr.mxu0 0.0
        %944 = vmatpush1.xpose.msra.mxu0 0.0
        %945 = vmatprep.subr.mxu0 0.0
        %946 = vmatpush1.xpose.msra.mxu0 0.0
        %947 = vmatprep.subr.mxu0 0.0
        %948 = vmatpush1.xpose.msra.mxu0 0.0
        %949 = vmatprep.subr.mxu0 0.0
        %950 = vmatpush1.xpose.msra.mxu0 0.0
        %951 = vmatprep.subr.mxu0 0.0
        %952 = vmatpush1.xpose.msra.mxu0 0.0
        %953 = vmatprep.subr.mxu0 0.0
        %954 = vmatpush1.xpose.msra.mxu0 0.0
        %955 = vmatprep.subr.mxu0 0.0
        %956 = vmatpush1.xpose.msra.mxu0 0.0
        %957 = vmatprep.subr.mxu0 0.0
        %958 = vmatpush1.xpose.msra.mxu0 0.0
        %959 = vmatprep.subr.mxu0 0.0
        %960 = vmatpush1.xpose.msra.mxu0 0.0
        %961 = vmatprep.subr.mxu0 0.0
        %962 = vmatpush1.xpose.msra.mxu0 0.0
        %963 = vmatprep.subr.mxu0 0.0
        %964 = vmatpush1.xpose.msra.mxu0 0.0
        %965 = vmatprep.subr.mxu0 0.0
        %966 = vmatpush1.xpose.msra.mxu0 0.0
        %967 = vmatprep.subr.mxu0 0.0
        %968 = vmatpush1.xpose.msra.mxu0 0.0
        %969 = vmatprep.subr.mxu0 0.0
        %970 = vmatpush1.xpose.msra.mxu0 0.0
        %971 = vmatprep.subr.mxu0 0.0
        %972 = vmatpush1.xpose.msra.mxu0 0.0
        %973 = vmatprep.subr.mxu0 0.0
        %974 = vmatpush1.xpose.msra.mxu0 0.0
        %975 = vmatprep.subr.mxu0 0.0
        %976 = vmatpush1.xpose.msra.mxu0 0.0
        %977 = vmatprep.subr.mxu0 0.0
        %978 = vmatpush1.xpose.msra.mxu0 0.0
        %979 = vmatprep.mubr.f32.mxu0 0.0
        %980 = vmatmul.mubr.f32.gmra.mrb[0].mxu0 %v422
        %v981 = vpop.f32.mrb[0].mxu0
        %v982 = vadd.f32 0.0, %v981
        %v983 = vpop.f32.mrb[0].mxu0
        %984 = vdwg.mxu0
        %vm985 = vcmask 64512
        %v986 = vsel %vm985, %v492, -inf
        %987 = vmax.xlane.f32.xlu0 %v986
        %v988 = vpop.xlane.xlu0 %987
        %v989 = vsel %vm985, %v562, -inf
        %990 = vmax.xlane.f32.xlu0 %v989
        %v991 = vpop.xlane.xlu0 %990
        %v992 = vsel %vm985, %v632, -inf
        %993 = vmax.xlane.f32.xlu0 %v992
        %v994 = vpop.xlane.xlu0 %993
        %v995 = vsel %vm985, %v702, -inf
        %996 = vmax.xlane.f32.xlu0 %v995
        %v997 = vpop.xlane.xlu0 %996
        %v998 = vsel %vm985, %v772, -inf
        %999 = vmax.xlane.f32.xlu0 %v998
        %v1000 = vpop.xlane.xlu0 %999
        %v1001 = vsel %vm985, %v842, -inf
        %1002 = vmax.xlane.f32.xlu0 %v1001
        %v1003 = vpop.xlane.xlu0 %1002
        %v1004 = vsel %vm985, %v912, -inf
        %1005 = vmax.xlane.f32.xlu0 %v1004
        %v1006 = vpop.xlane.xlu0 %1005
        %v1007 = vsel %vm985, %v982, -inf
        %1008 = vmax.xlane.f32.xlu0 %v1007
        %v1009 = vpop.xlane.xlu0 %1008
        %v1010 = vsub.f32 %v492, %v988
        %v1011 = vsub.f32 %v562, %v991
        %v1012 = vsub.f32 %v632, %v994
        %v1013 = vsub.f32 %v702, %v997
        %v1014 = vsub.f32 %v772, %v1000
        %v1015 = vsub.f32 %v842, %v1003
        %v1016 = vsub.f32 %v912, %v1006
        %v1017 = vsub.f32 %v982, %v1009
        %v1018 = vmul.f32 %v1010, 1.442695
        %v1019 = vpow.pop %v1018
        %v1020 = vmul.f32 %v1011, 1.442695
        %v1021 = vpow.pop %v1020
        %v1022 = vmul.f32 %v1012, 1.442695
        %v1023 = vpow.pop %v1022
        %v1024 = vmul.f32 %v1013, 1.442695
        %v1025 = vpow.pop %v1024
        %v1026 = vmul.f32 %v1014, 1.442695
        %v1027 = vpow.pop %v1026
        %v1028 = vmul.f32 %v1015, 1.442695
        %v1029 = vpow.pop %v1028
        %v1030 = vmul.f32 %v1016, 1.442695
        %v1031 = vpow.pop %v1030
        %v1032 = vmul.f32 %v1017, 1.442695
        %v1033 = vpow.pop %v1032
        %v1034 = vsel %vm985, %v1019, 0.0
        %1035 = vadd.xlane.f32.xlu0 %v1034
        %v1036 = vpop.xlane.xlu0 %1035
        %v1037 = vsel %vm985, %v1021, 0.0
        %1038 = vadd.xlane.f32.xlu0 %v1037
        %v1039 = vpop.xlane.xlu0 %1038
        %v1040 = vsel %vm985, %v1023, 0.0
        %1041 = vadd.xlane.f32.xlu0 %v1040
        %v1042 = vpop.xlane.xlu0 %1041
        %v1043 = vsel %vm985, %v1025, 0.0
        %1044 = vadd.xlane.f32.xlu0 %v1043
        %v1045 = vpop.xlane.xlu0 %1044
        %v1046 = vsel %vm985, %v1027, 0.0
        %1047 = vadd.xlane.f32.xlu0 %v1046
        %v1048 = vpop.xlane.xlu0 %1047
        %v1049 = vsel %vm985, %v1029, 0.0
        %1050 = vadd.xlane.f32.xlu0 %v1049
        %v1051 = vpop.xlane.xlu0 %1050
        %v1052 = vsel %vm985, %v1031, 0.0
        %1053 = vadd.xlane.f32.xlu0 %v1052
        %v1054 = vpop.xlane.xlu0 %1053
        %v1055 = vsel %vm985, %v1033, 0.0
        %1056 = vadd.xlane.f32.xlu0 %v1055
        %v1057 = vpop.xlane.xlu0 %1056
        %v1058 = vrcp.pop %v1036
        %v1059 = vrcp.pop %v1039
        %v1060 = vrcp.pop %v1042
        %v1061 = vrcp.pop %v1045
        %v1062 = vrcp.pop %v1048
        %v1063 = vrcp.pop %v1051
        %v1064 = vrcp.pop %v1054
        %v1065 = vrcp.pop %v1057
        %v1066 = vmul.f32 %v1019, %v1058
        %v1067 = vmul.f32 %v1021, %v1059
        %v1068 = vmul.f32 %v1023, %v1060
        %v1069 = vmul.f32 %v1025, %v1061
        %v1070 = vmul.f32 %v1027, %v1062
        %v1071 = vmul.f32 %v1029, %v1063
        %v1072 = vmul.f32 %v1031, %v1064
        %v1073 = vmul.f32 %v1033, %v1065
        %v1075 = vsel %vm985, %v1066, 0
        %1077 = vmatprep.subr.mxu0 0.0
        %1078 = vmatpush1.msra.mxu0 %v296
        %1079 = vmatprep.subr.mxu0 0.0
        %1080 = vmatpush1.msra.mxu0 0.0
        %1081 = vmatprep.subr.mxu0 0.0
        %1082 = vmatpush1.msra.mxu0 0.0
        %1083 = vmatprep.subr.mxu0 0.0
        %1084 = vmatpush1.msra.mxu0 0.0
        %1085 = vmatprep.subr.mxu0 0.0
        %1086 = vmatpush1.msra.mxu0 0.0
        %1087 = vmatprep.subr.mxu0 0.0
        %1088 = vmatpush1.msra.mxu0 0.0
        %1089 = vmatprep.subr.mxu0 0.0
        %1090 = vmatpush1.msra.mxu0 0.0
        %1091 = vmatprep.subr.mxu0 0.0
        %1092 = vmatpush1.msra.mxu0 0.0
        %1093 = vmatprep.subr.mxu0 0.0
        %1094 = vmatpush1.msra.mxu0 0.0
        %1095 = vmatprep.subr.mxu0 0.0
        %1096 = vmatpush1.msra.mxu0 0.0
        %1097 = vmatprep.subr.mxu0 0.0
        %1098 = vmatpush1.msra.mxu0 0.0
        %1099 = vmatprep.subr.mxu0 0.0
        %1100 = vmatpush1.msra.mxu0 0.0
        %1101 = vmatprep.subr.mxu0 0.0
        %1102 = vmatpush1.msra.mxu0 0.0
        %1103 = vmatprep.subr.mxu0 0.0
        %1104 = vmatpush1.msra.mxu0 0.0
        %1105 = vmatprep.subr.mxu0 0.0
        %1106 = vmatpush1.msra.mxu0 0.0
        %1107 = vmatprep.subr.mxu0 0.0
        %1108 = vmatpush1.msra.mxu0 0.0
        %1109 = vmatprep.subr.mxu0 0.0
        %1110 = vmatpush1.msra.mxu0 0.0
        %1111 = vmatprep.subr.mxu0 0.0
        %1112 = vmatpush1.msra.mxu0 0.0
        %1113 = vmatprep.subr.mxu0 0.0
        %1114 = vmatpush1.msra.mxu0 0.0
        %1115 = vmatprep.subr.mxu0 0.0
        %1116 = vmatpush1.msra.mxu0 0.0
        %1117 = vmatprep.subr.mxu0 0.0
        %1118 = vmatpush1.msra.mxu0 0.0
        %1119 = vmatprep.subr.mxu0 0.0
        %1120 = vmatpush1.msra.mxu0 0.0
        %1121 = vmatprep.subr.mxu0 0.0
        %1122 = vmatpush1.msra.mxu0 0.0
        %1123 = vmatprep.subr.mxu0 0.0
        %1124 = vmatpush1.msra.mxu0 0.0
        %1125 = vmatprep.subr.mxu0 0.0
        %1126 = vmatpush1.msra.mxu0 0.0
        %1127 = vmatprep.subr.mxu0 0.0
        %1128 = vmatpush1.msra.mxu0 0.0
        %1129 = vmatprep.subr.mxu0 0.0
        %1130 = vmatpush1.msra.mxu0 0.0
        %1131 = vmatprep.subr.mxu0 0.0
        %1132 = vmatpush1.msra.mxu0 0.0
        %1133 = vmatprep.subr.mxu0 0.0
        %1134 = vmatpush1.msra.mxu0 0.0
        %1135 = vmatprep.subr.mxu0 0.0
        %1136 = vmatpush1.msra.mxu0 0.0
        %1137 = vmatprep.subr.mxu0 0.0
        %1138 = vmatpush1.msra.mxu0 0.0
        %1139 = vmatprep.subr.mxu0 0.0
        %1140 = vmatpush1.msra.mxu0 0.0
        %1141 = vmatprep.mubr.f32.mxu0 0.0
        %1142 = vmatmul.mubr.f32.gmra.mrb[0].mxu0 %v1075
        %v1143 = vpop.f32.mrb[0].mxu0
        %v1144 = vadd.f32 0.0, %v1143
        %v1145 = vpop.f32.mrb[0].mxu0
        %1146 = vdwg.mxu0
        %v1148 = vsel %vm985, %v1067, 0
        %1150 = vmatprep.subr.mxu0 0.0
        %1151 = vmatpush1.msra.mxu0 %v297
        %1152 = vmatprep.subr.mxu0 0.0
        %1153 = vmatpush1.msra.mxu0 0.0
        %1154 = vmatprep.subr.mxu0 0.0
        %1155 = vmatpush1.msra.mxu0 0.0
        %1156 = vmatprep.subr.mxu0 0.0
        %1157 = vmatpush1.msra.mxu0 0.0
        %1158 = vmatprep.subr.mxu0 0.0
        %1159 = vmatpush1.msra.mxu0 0.0
        %1160 = vmatprep.subr.mxu0 0.0
        %1161 = vmatpush1.msra.mxu0 0.0
        %1162 = vmatprep.subr.mxu0 0.0
        %1163 = vmatpush1.msra.mxu0 0.0
        %1164 = vmatprep.subr.mxu0 0.0
        %1165 = vmatpush1.msra.mxu0 0.0
        %1166 = vmatprep.subr.mxu0 0.0
        %1167 = vmatpush1.msra.mxu0 0.0
        %1168 = vmatprep.subr.mxu0 0.0
        %1169 = vmatpush1.msra.mxu0 0.0
        %1170 = vmatprep.subr.mxu0 0.0
        %1171 = vmatpush1.msra.mxu0 0.0
        %1172 = vmatprep.subr.mxu0 0.0
        %1173 = vmatpush1.msra.mxu0 0.0
        %1174 = vmatprep.subr.mxu0 0.0
        %1175 = vmatpush1.msra.mxu0 0.0
        %1176 = vmatprep.subr.mxu0 0.0
        %1177 = vmatpush1.msra.mxu0 0.0
        %1178 = vmatprep.subr.mxu0 0.0
        %1179 = vmatpush1.msra.mxu0 0.0
        %1180 = vmatprep.subr.mxu0 0.0
        %1181 = vmatpush1.msra.mxu0 0.0
        %1182 = vmatprep.subr.mxu0 0.0
        %1183 = vmatpush1.msra.mxu0 0.0
        %1184 = vmatprep.subr.mxu0 0.0
        %1185 = vmatpush1.msra.mxu0 0.0
        %1186 = vmatprep.subr.mxu0 0.0
        %1187 = vmatpush1.msra.mxu0 0.0
        %1188 = vmatprep.subr.mxu0 0.0
        %1189 = vmatpush1.msra.mxu0 0.0
        %1190 = vmatprep.subr.mxu0 0.0
        %1191 = vmatpush1.msra.mxu0 0.0
        %1192 = vmatprep.subr.mxu0 0.0
        %1193 = vmatpush1.msra.mxu0 0.0
        %1194 = vmatprep.subr.mxu0 0.0
        %1195 = vmatpush1.msra.mxu0 0.0
        %1196 = vmatprep.subr.mxu0 0.0
        %1197 = vmatpush1.msra.mxu0 0.0
        %1198 = vmatprep.subr.mxu0 0.0
        %1199 = vmatpush1.msra.mxu0 0.0
        %1200 = vmatprep.subr.mxu0 0.0
        %1201 = vmatpush1.msra.mxu0 0.0
        %1202 = vmatprep.subr.mxu0 0.0
        %1203 = vmatpush1.msra.mxu0 0.0
        %1204 = vmatprep.subr.mxu0 0.0
        %1205 = vmatpush1.msra.mxu0 0.0
        %1206 = vmatprep.subr.mxu0 0.0
        %1207 = vmatpush1.msra.mxu0 0.0
        %1208 = vmatprep.subr.mxu0 0.0
        %1209 = vmatpush1.msra.mxu0 0.0
        %1210 = vmatprep.subr.mxu0 0.0
        %1211 = vmatpush1.msra.mxu0 0.0
        %1212 = vmatprep.subr.mxu0 0.0
        %1213 = vmatpush1.msra.mxu0 0.0
        %1214 = vmatprep.mubr.f32.mxu0 0.0
        %1215 = vmatmul.mubr.f32.gmra.mrb[0].mxu0 %v1148
        %v1216 = vpop.f32.mrb[0].mxu0
        %v1217 = vadd.f32 0.0, %v1216
        %v1218 = vpop.f32.mrb[0].mxu0
        %1219 = vdwg.mxu0
        %v1221 = vsel %vm985, %v1068, 0
        %1223 = vmatprep.subr.mxu0 0.0
        %1224 = vmatpush1.msra.mxu0 %v298
        %1225 = vmatprep.subr.mxu0 0.0
        %1226 = vmatpush1.msra.mxu0 0.0
        %1227 = vmatprep.subr.mxu0 0.0
        %1228 = vmatpush1.msra.mxu0 0.0
        %1229 = vmatprep.subr.mxu0 0.0
        %1230 = vmatpush1.msra.mxu0 0.0
        %1231 = vmatprep.subr.mxu0 0.0
        %1232 = vmatpush1.msra.mxu0 0.0
        %1233 = vmatprep.subr.mxu0 0.0
        %1234 = vmatpush1.msra.mxu0 0.0
        %1235 = vmatprep.subr.mxu0 0.0
        %1236 = vmatpush1.msra.mxu0 0.0
        %1237 = vmatprep.subr.mxu0 0.0
        %1238 = vmatpush1.msra.mxu0 0.0
        %1239 = vmatprep.subr.mxu0 0.0
        %1240 = vmatpush1.msra.mxu0 0.0
        %1241 = vmatprep.subr.mxu0 0.0
        %1242 = vmatpush1.msra.mxu0 0.0
        %1243 = vmatprep.subr.mxu0 0.0
        %1244 = vmatpush1.msra.mxu0 0.0
        %1245 = vmatprep.subr.mxu0 0.0
        %1246 = vmatpush1.msra.mxu0 0.0
        %1247 = vmatprep.subr.mxu0 0.0
        %1248 = vmatpush1.msra.mxu0 0.0
        %1249 = vmatprep.subr.mxu0 0.0
        %1250 = vmatpush1.msra.mxu0 0.0
        %1251 = vmatprep.subr.mxu0 0.0
        %1252 = vmatpush1.msra.mxu0 0.0
        %1253 = vmatprep.subr.mxu0 0.0
        %1254 = vmatpush1.msra.mxu0 0.0
        %1255 = vmatprep.subr.mxu0 0.0
        %1256 = vmatpush1.msra.mxu0 0.0
        %1257 = vmatprep.subr.mxu0 0.0
        %1258 = vmatpush1.msra.mxu0 0.0
        %1259 = vmatprep.subr.mxu0 0.0
        %1260 = vmatpush1.msra.mxu0 0.0
        %1261 = vmatprep.subr.mxu0 0.0
        %1262 = vmatpush1.msra.mxu0 0.0
        %1263 = vmatprep.subr.mxu0 0.0
        %1264 = vmatpush1.msra.mxu0 0.0
        %1265 = vmatprep.subr.mxu0 0.0
        %1266 = vmatpush1.msra.mxu0 0.0
        %1267 = vmatprep.subr.mxu0 0.0
        %1268 = vmatpush1.msra.mxu0 0.0
        %1269 = vmatprep.subr.mxu0 0.0
        %1270 = vmatpush1.msra.mxu0 0.0
        %1271 = vmatprep.subr.mxu0 0.0
        %1272 = vmatpush1.msra.mxu0 0.0
        %1273 = vmatprep.subr.mxu0 0.0
        %1274 = vmatpush1.msra.mxu0 0.0
        %1275 = vmatprep.subr.mxu0 0.0
        %1276 = vmatpush1.msra.mxu0 0.0
        %1277 = vmatprep.subr.mxu0 0.0
        %1278 = vmatpush1.msra.mxu0 0.0
        %1279 = vmatprep.subr.mxu0 0.0
        %1280 = vmatpush1.msra.mxu0 0.0
        %1281 = vmatprep.subr.mxu0 0.0
        %1282 = vmatpush1.msra.mxu0 0.0
        %1283 = vmatprep.subr.mxu0 0.0
        %1284 = vmatpush1.msra.mxu0 0.0
        %1285 = vmatprep.subr.mxu0 0.0
        %1286 = vmatpush1.msra.mxu0 0.0
        %1287 = vmatprep.mubr.f32.mxu0 0.0
        %1288 = vmatmul.mubr.f32.gmra.mrb[0].mxu0 %v1221
        %v1289 = vpop.f32.mrb[0].mxu0
        %v1290 = vadd.f32 0.0, %v1289
        %v1291 = vpop.f32.mrb[0].mxu0
        %1292 = vdwg.mxu0
        %v1294 = vsel %vm985, %v1069, 0
        %1296 = vmatprep.subr.mxu0 0.0
        %1297 = vmatpush1.msra.mxu0 %v299
        %1298 = vmatprep.subr.mxu0 0.0
        %1299 = vmatpush1.msra.mxu0 0.0
        %1300 = vmatprep.subr.mxu0 0.0
        %1301 = vmatpush1.msra.mxu0 0.0
        %1302 = vmatprep.subr.mxu0 0.0
        %1303 = vmatpush1.msra.mxu0 0.0
        %1304 = vmatprep.subr.mxu0 0.0
        %1305 = vmatpush1.msra.mxu0 0.0
        %1306 = vmatprep.subr.mxu0 0.0
        %1307 = vmatpush1.msra.mxu0 0.0
        %1308 = vmatprep.subr.mxu0 0.0
        %1309 = vmatpush1.msra.mxu0 0.0
        %1310 = vmatprep.subr.mxu0 0.0
        %1311 = vmatpush1.msra.mxu0 0.0
        %1312 = vmatprep.subr.mxu0 0.0
        %1313 = vmatpush1.msra.mxu0 0.0
        %1314 = vmatprep.subr.mxu0 0.0
        %1315 = vmatpush1.msra.mxu0 0.0
        %1316 = vmatprep.subr.mxu0 0.0
        %1317 = vmatpush1.msra.mxu0 0.0
        %1318 = vmatprep.subr.mxu0 0.0
        %1319 = vmatpush1.msra.mxu0 0.0
        %1320 = vmatprep.subr.mxu0 0.0
        %1321 = vmatpush1.msra.mxu0 0.0
        %1322 = vmatprep.subr.mxu0 0.0
        %1323 = vmatpush1.msra.mxu0 0.0
        %1324 = vmatprep.subr.mxu0 0.0
        %1325 = vmatpush1.msra.mxu0 0.0
        %1326 = vmatprep.subr.mxu0 0.0
        %1327 = vmatpush1.msra.mxu0 0.0
        %1328 = vmatprep.subr.mxu0 0.0
        %1329 = vmatpush1.msra.mxu0 0.0
        %1330 = vmatprep.subr.mxu0 0.0
        %1331 = vmatpush1.msra.mxu0 0.0
        %1332 = vmatprep.subr.mxu0 0.0
        %1333 = vmatpush1.msra.mxu0 0.0
        %1334 = vmatprep.subr.mxu0 0.0
        %1335 = vmatpush1.msra.mxu0 0.0
        %1336 = vmatprep.subr.mxu0 0.0
        %1337 = vmatpush1.msra.mxu0 0.0
        %1338 = vmatprep.subr.mxu0 0.0
        %1339 = vmatpush1.msra.mxu0 0.0
        %1340 = vmatprep.subr.mxu0 0.0
        %1341 = vmatpush1.msra.mxu0 0.0
        %1342 = vmatprep.subr.mxu0 0.0
        %1343 = vmatpush1.msra.mxu0 0.0
        %1344 = vmatprep.subr.mxu0 0.0
        %1345 = vmatpush1.msra.mxu0 0.0
        %1346 = vmatprep.subr.mxu0 0.0
        %1347 = vmatpush1.msra.mxu0 0.0
        %1348 = vmatprep.subr.mxu0 0.0
        %1349 = vmatpush1.msra.mxu0 0.0
        %1350 = vmatprep.subr.mxu0 0.0
        %1351 = vmatpush1.msra.mxu0 0.0
        %1352 = vmatprep.subr.mxu0 0.0
        %1353 = vmatpush1.msra.mxu0 0.0
        %1354 = vmatprep.subr.mxu0 0.0
        %1355 = vmatpush1.msra.mxu0 0.0
        %1356 = vmatprep.subr.mxu0 0.0
        %1357 = vmatpush1.msra.mxu0 0.0
        %1358 = vmatprep.subr.mxu0 0.0
        %1359 = vmatpush1.msra.mxu0 0.0
        %1360 = vmatprep.mubr.f32.mxu0 0.0
        %1361 = vmatmul.mubr.f32.gmra.mrb[0].mxu0 %v1294
        %v1362 = vpop.f32.mrb[0].mxu0
        %v1363 = vadd.f32 0.0, %v1362
        %v1364 = vpop.f32.mrb[0].mxu0
        %1365 = vdwg.mxu0
        %v1367 = vsel %vm985, %v1070, 0
        %1369 = vmatprep.subr.mxu0 0.0
        %1370 = vmatpush1.msra.mxu0 %v300
        %1371 = vmatprep.subr.mxu0 0.0
        %1372 = vmatpush1.msra.mxu0 0.0
        %1373 = vmatprep.subr.mxu0 0.0
        %1374 = vmatpush1.msra.mxu0 0.0
        %1375 = vmatprep.subr.mxu0 0.0
        %1376 = vmatpush1.msra.mxu0 0.0
        %1377 = vmatprep.subr.mxu0 0.0
        %1378 = vmatpush1.msra.mxu0 0.0
        %1379 = vmatprep.subr.mxu0 0.0
        %1380 = vmatpush1.msra.mxu0 0.0
        %1381 = vmatprep.subr.mxu0 0.0
        %1382 = vmatpush1.msra.mxu0 0.0
        %1383 = vmatprep.subr.mxu0 0.0
        %1384 = vmatpush1.msra.mxu0 0.0
        %1385 = vmatprep.subr.mxu0 0.0
        %1386 = vmatpush1.msra.mxu0 0.0
        %1387 = vmatprep.subr.mxu0 0.0
        %1388 = vmatpush1.msra.mxu0 0.0
        %1389 = vmatprep.subr.mxu0 0.0
        %1390 = vmatpush1.msra.mxu0 0.0
        %1391 = vmatprep.subr.mxu0 0.0
        %1392 = vmatpush1.msra.mxu0 0.0
        %1393 = vmatprep.subr.mxu0 0.0
        %1394 = vmatpush1.msra.mxu0 0.0
        %1395 = vmatprep.subr.mxu0 0.0
        %1396 = vmatpush1.msra.mxu0 0.0
        %1397 = vmatprep.subr.mxu0 0.0
        %1398 = vmatpush1.msra.mxu0 0.0
        %1399 = vmatprep.subr.mxu0 0.0
        %1400 = vmatpush1.msra.mxu0 0.0
        %1401 = vmatprep.subr.mxu0 0.0
        %1402 = vmatpush1.msra.mxu0 0.0
        %1403 = vmatprep.subr.mxu0 0.0
        %1404 = vmatpush1.msra.mxu0 0.0
        %1405 = vmatprep.subr.mxu0 0.0
        %1406 = vmatpush1.msra.mxu0 0.0
        %1407 = vmatprep.subr.mxu0 0.0
        %1408 = vmatpush1.msra.mxu0 0.0
        %1409 = vmatprep.subr.mxu0 0.0
        %1410 = vmatpush1.msra.mxu0 0.0
        %1411 = vmatprep.subr.mxu0 0.0
        %1412 = vmatpush1.msra.mxu0 0.0
        %1413 = vmatprep.subr.mxu0 0.0
        %1414 = vmatpush1.msra.mxu0 0.0
        %1415 = vmatprep.subr.mxu0 0.0
        %1416 = vmatpush1.msra.mxu0 0.0
        %1417 = vmatprep.subr.mxu0 0.0
        %1418 = vmatpush1.msra.mxu0 0.0
        %1419 = vmatprep.subr.mxu0 0.0
        %1420 = vmatpush1.msra.mxu0 0.0
        %1421 = vmatprep.subr.mxu0 0.0
        %1422 = vmatpush1.msra.mxu0 0.0
        %1423 = vmatprep.subr.mxu0 0.0
        %1424 = vmatpush1.msra.mxu0 0.0
        %1425 = vmatprep.subr.mxu0 0.0
        %1426 = vmatpush1.msra.mxu0 0.0
        %1427 = vmatprep.subr.mxu0 0.0
        %1428 = vmatpush1.msra.mxu0 0.0
        %1429 = vmatprep.subr.mxu0 0.0
        %1430 = vmatpush1.msra.mxu0 0.0
        %1431 = vmatprep.subr.mxu0 0.0
        %1432 = vmatpush1.msra.mxu0 0.0
        %1433 = vmatprep.mubr.f32.mxu0 0.0
        %1434 = vmatmul.mubr.f32.gmra.mrb[0].mxu0 %v1367
        %v1435 = vpop.f32.mrb[0].mxu0
        %v1436 = vadd.f32 0.0, %v1435
        %v1437 = vpop.f32.mrb[0].mxu0
        %1438 = vdwg.mxu0
        %v1440 = vsel %vm985, %v1071, 0
        %1442 = vmatprep.subr.mxu0 0.0
        %1443 = vmatpush1.msra.mxu0 %v301
        %1444 = vmatprep.subr.mxu0 0.0
        %1445 = vmatpush1.msra.mxu0 0.0
        %1446 = vmatprep.subr.mxu0 0.0
        %1447 = vmatpush1.msra.mxu0 0.0
        %1448 = vmatprep.subr.mxu0 0.0
        %1449 = vmatpush1.msra.mxu0 0.0
        %1450 = vmatprep.subr.mxu0 0.0
        %1451 = vmatpush1.msra.mxu0 0.0
        %1452 = vmatprep.subr.mxu0 0.0
        %1453 = vmatpush1.msra.mxu0 0.0
        %1454 = vmatprep.subr.mxu0 0.0
        %1455 = vmatpush1.msra.mxu0 0.0
        %1456 = vmatprep.subr.mxu0 0.0
        %1457 = vmatpush1.msra.mxu0 0.0
        %1458 = vmatprep.subr.mxu0 0.0
        %1459 = vmatpush1.msra.mxu0 0.0
        %1460 = vmatprep.subr.mxu0 0.0
        %1461 = vmatpush1.msra.mxu0 0.0
        %1462 = vmatprep.subr.mxu0 0.0
        %1463 = vmatpush1.msra.mxu0 0.0
        %1464 = vmatprep.subr.mxu0 0.0
        %1465 = vmatpush1.msra.mxu0 0.0
        %1466 = vmatprep.subr.mxu0 0.0
        %1467 = vmatpush1.msra.mxu0 0.0
        %1468 = vmatprep.subr.mxu0 0.0
        %1469 = vmatpush1.msra.mxu0 0.0
        %1470 = vmatprep.subr.mxu0 0.0
        %1471 = vmatpush1.msra.mxu0 0.0
        %1472 = vmatprep.subr.mxu0 0.0
        %1473 = vmatpush1.msra.mxu0 0.0
        %1474 = vmatprep.subr.mxu0 0.0
        %1475 = vmatpush1.msra.mxu0 0.0
        %1476 = vmatprep.subr.mxu0 0.0
        %1477 = vmatpush1.msra.mxu0 0.0
        %1478 = vmatprep.subr.mxu0 0.0
        %1479 = vmatpush1.msra.mxu0 0.0
        %1480 = vmatprep.subr.mxu0 0.0
        %1481 = vmatpush1.msra.mxu0 0.0
        %1482 = vmatprep.subr.mxu0 0.0
        %1483 = vmatpush1.msra.mxu0 0.0
        %1484 = vmatprep.subr.mxu0 0.0
        %1485 = vmatpush1.msra.mxu0 0.0
        %1486 = vmatprep.subr.mxu0 0.0
        %1487 = vmatpush1.msra.mxu0 0.0
        %1488 = vmatprep.subr.mxu0 0.0
        %1489 = vmatpush1.msra.mxu0 0.0
        %1490 = vmatprep.subr.mxu0 0.0
        %1491 = vmatpush1.msra.mxu0 0.0
        %1492 = vmatprep.subr.mxu0 0.0
        %1493 = vmatpush1.msra.mxu0 0.0
        %1494 = vmatprep.subr.mxu0 0.0
        %1495 = vmatpush1.msra.mxu0 0.0
        %1496 = vmatprep.subr.mxu0 0.0
        %1497 = vmatpush1.msra.mxu0 0.0
        %1498 = vmatprep.subr.mxu0 0.0
        %1499 = vmatpush1.msra.mxu0 0.0
        %1500 = vmatprep.subr.mxu0 0.0
        %1501 = vmatpush1.msra.mxu0 0.0
        %1502 = vmatprep.subr.mxu0 0.0
        %1503 = vmatpush1.msra.mxu0 0.0
        %1504 = vmatprep.subr.mxu0 0.0
        %1505 = vmatpush1.msra.mxu0 0.0
        %1506 = vmatprep.mubr.f32.mxu0 0.0
        %1507 = vmatmul.mubr.f32.gmra.mrb[0].mxu0 %v1440
        %v1508 = vpop.f32.mrb[0].mxu0
        %v1509 = vadd.f32 0.0, %v1508
        %v1510 = vpop.f32.mrb[0].mxu0
        %1511 = vdwg.mxu0
        %v1513 = vsel %vm985, %v1072, 0
        %1515 = vmatprep.subr.mxu0 0.0
        %1516 = vmatpush1.msra.mxu0 %v302
        %1517 = vmatprep.subr.mxu0 0.0
        %1518 = vmatpush1.msra.mxu0 0.0
        %1519 = vmatprep.subr.mxu0 0.0
        %1520 = vmatpush1.msra.mxu0 0.0
        %1521 = vmatprep.subr.mxu0 0.0
        %1522 = vmatpush1.msra.mxu0 0.0
        %1523 = vmatprep.subr.mxu0 0.0
        %1524 = vmatpush1.msra.mxu0 0.0
        %1525 = vmatprep.subr.mxu0 0.0
        %1526 = vmatpush1.msra.mxu0 0.0
        %1527 = vmatprep.subr.mxu0 0.0
        %1528 = vmatpush1.msra.mxu0 0.0
        %1529 = vmatprep.subr.mxu0 0.0
        %1530 = vmatpush1.msra.mxu0 0.0
        %1531 = vmatprep.subr.mxu0 0.0
        %1532 = vmatpush1.msra.mxu0 0.0
        %1533 = vmatprep.subr.mxu0 0.0
        %1534 = vmatpush1.msra.mxu0 0.0
        %1535 = vmatprep.subr.mxu0 0.0
        %1536 = vmatpush1.msra.mxu0 0.0
        %1537 = vmatprep.subr.mxu0 0.0
        %1538 = vmatpush1.msra.mxu0 0.0
        %1539 = vmatprep.subr.mxu0 0.0
        %1540 = vmatpush1.msra.mxu0 0.0
        %1541 = vmatprep.subr.mxu0 0.0
        %1542 = vmatpush1.msra.mxu0 0.0
        %1543 = vmatprep.subr.mxu0 0.0
        %1544 = vmatpush1.msra.mxu0 0.0
        %1545 = vmatprep.subr.mxu0 0.0
        %1546 = vmatpush1.msra.mxu0 0.0
        %1547 = vmatprep.subr.mxu0 0.0
        %1548 = vmatpush1.msra.mxu0 0.0
        %1549 = vmatprep.subr.mxu0 0.0
        %1550 = vmatpush1.msra.mxu0 0.0
        %1551 = vmatprep.subr.mxu0 0.0
        %1552 = vmatpush1.msra.mxu0 0.0
        %1553 = vmatprep.subr.mxu0 0.0
        %1554 = vmatpush1.msra.mxu0 0.0
        %1555 = vmatprep.subr.mxu0 0.0
        %1556 = vmatpush1.msra.mxu0 0.0
        %1557 = vmatprep.subr.mxu0 0.0
        %1558 = vmatpush1.msra.mxu0 0.0
        %1559 = vmatprep.subr.mxu0 0.0
        %1560 = vmatpush1.msra.mxu0 0.0
        %1561 = vmatprep.subr.mxu0 0.0
        %1562 = vmatpush1.msra.mxu0 0.0
        %1563 = vmatprep.subr.mxu0 0.0
        %1564 = vmatpush1.msra.mxu0 0.0
        %1565 = vmatprep.subr.mxu0 0.0
        %1566 = vmatpush1.msra.mxu0 0.0
        %1567 = vmatprep.subr.mxu0 0.0
        %1568 = vmatpush1.msra.mxu0 0.0
        %1569 = vmatprep.subr.mxu0 0.0
        %1570 = vmatpush1.msra.mxu0 0.0
        %1571 = vmatprep.subr.mxu0 0.0
        %1572 = vmatpush1.msra.mxu0 0.0
        %1573 = vmatprep.subr.mxu0 0.0
        %1574 = vmatpush1.msra.mxu0 0.0
        %1575 = vmatprep.subr.mxu0 0.0
        %1576 = vmatpush1.msra.mxu0 0.0
        %1577 = vmatprep.subr.mxu0 0.0
        %1578 = vmatpush1.msra.mxu0 0.0
        %1579 = vmatprep.mubr.f32.mxu0 0.0
        %1580 = vmatmul.mubr.f32.gmra.mrb[0].mxu0 %v1513
        %v1581 = vpop.f32.mrb[0].mxu0
        %v1582 = vadd.f32 0.0, %v1581
        %v1583 = vpop.f32.mrb[0].mxu0
        %1584 = vdwg.mxu0
        %v1586 = vsel %vm985, %v1073, 0
        %1588 = vmatprep.subr.mxu0 0.0
        %1589 = vmatpush1.msra.mxu0 %v303
        %1590 = vmatprep.subr.mxu0 0.0
        %1591 = vmatpush1.msra.mxu0 0.0
        %1592 = vmatprep.subr.mxu0 0.0
        %1593 = vmatpush1.msra.mxu0 0.0
        %1594 = vmatprep.subr.mxu0 0.0
        %1595 = vmatpush1.msra.mxu0 0.0
        %1596 = vmatprep.subr.mxu0 0.0
        %1597 = vmatpush1.msra.mxu0 0.0
        %1598 = vmatprep.subr.mxu0 0.0
        %1599 = vmatpush1.msra.mxu0 0.0
        %1600 = vmatprep.subr.mxu0 0.0
        %1601 = vmatpush1.msra.mxu0 0.0
        %1602 = vmatprep.subr.mxu0 0.0
        %1603 = vmatpush1.msra.mxu0 0.0
        %1604 = vmatprep.subr.mxu0 0.0
        %1605 = vmatpush1.msra.mxu0 0.0
        %1606 = vmatprep.subr.mxu0 0.0
        %1607 = vmatpush1.msra.mxu0 0.0
        %1608 = vmatprep.subr.mxu0 0.0
        %1609 = vmatpush1.msra.mxu0 0.0
        %1610 = vmatprep.subr.mxu0 0.0
        %1611 = vmatpush1.msra.mxu0 0.0
        %1612 = vmatprep.subr.mxu0 0.0
        %1613 = vmatpush1.msra.mxu0 0.0
        %1614 = vmatprep.subr.mxu0 0.0
        %1615 = vmatpush1.msra.mxu0 0.0
        %1616 = vmatprep.subr.mxu0 0.0
        %1617 = vmatpush1.msra.mxu0 0.0
        %1618 = vmatprep.subr.mxu0 0.0
        %1619 = vmatpush1.msra.mxu0 0.0
        %1620 = vmatprep.subr.mxu0 0.0
        %1621 = vmatpush1.msra.mxu0 0.0
        %1622 = vmatprep.subr.mxu0 0.0
        %1623 = vmatpush1.msra.mxu0 0.0
        %1624 = vmatprep.subr.mxu0 0.0
        %1625 = vmatpush1.msra.mxu0 0.0
        %1626 = vmatprep.subr.mxu0 0.0
        %1627 = vmatpush1.msra.mxu0 0.0
        %1628 = vmatprep.subr.mxu0 0.0
        %1629 = vmatpush1.msra.mxu0 0.0
        %1630 = vmatprep.subr.mxu0 0.0
        %1631 = vmatpush1.msra.mxu0 0.0
        %1632 = vmatprep.subr.mxu0 0.0
        %1633 = vmatpush1.msra.mxu0 0.0
        %1634 = vmatprep.subr.mxu0 0.0
        %1635 = vmatpush1.msra.mxu0 0.0
        %1636 = vmatprep.subr.mxu0 0.0
        %1637 = vmatpush1.msra.mxu0 0.0
        %1638 = vmatprep.subr.mxu0 0.0
        %1639 = vmatpush1.msra.mxu0 0.0
        %1640 = vmatprep.subr.mxu0 0.0
        %1641 = vmatpush1.msra.mxu0 0.0
        %1642 = vmatprep.subr.mxu0 0.0
        %1643 = vmatpush1.msra.mxu0 0.0
        %1644 = vmatprep.subr.mxu0 0.0
        %1645 = vmatpush1.msra.mxu0 0.0
        %1646 = vmatprep.subr.mxu0 0.0
        %1647 = vmatpush1.msra.mxu0 0.0
        %1648 = vmatprep.subr.mxu0 0.0
        %1649 = vmatpush1.msra.mxu0 0.0
        %1650 = vmatprep.subr.mxu0 0.0
        %1651 = vmatpush1.msra.mxu0 0.0
        %1652 = vmatprep.mubr.f32.mxu0 0.0
        %1653 = vmatmul.mubr.f32.gmra.mrb[0].mxu0 %v1586
        %v1654 = vpop.f32.mrb[0].mxu0
        %v1655 = vadd.f32 0.0, %v1654
        %v1656 = vpop.f32.mrb[0].mxu0
        %1657 = vdwg.mxu0
        %1658 = vst [vmem:[#allocation2] sm:$0xff] %v1144
        %1659 = vst [vmem:[#allocation2 + $0x10] sm:$0xff] %v1217
        %1660 = vst [vmem:[#allocation2 + $0x20] sm:$0xff] %v1290
        %1661 = vst [vmem:[#allocation2 + $0x30] sm:$0xff] %v1363
        %1662 = vst [vmem:[#allocation2 + $0x40] sm:$0xff] %v1436
        %1663 = vst [vmem:[#allocation2 + $0x50] sm:$0xff] %v1509
        %1664 = vst [vmem:[#allocation2 + $0x60] sm:$0xff] %v1582
        %1665 = vst [vmem:[#allocation2 + $0x70] sm:$0xff] %v1655
        %1666 = vst [vmem:[#allocation2 + $0x8] sm:$0xff] %v387
        %1667 = vst [vmem:[#allocation2 + $0x18] sm:$0xff] %v392
        %1668 = vst [vmem:[#allocation2 + $0x28] sm:$0xff] %v397
        %1669 = vst [vmem:[#allocation2 + $0x38] sm:$0xff] %v402
        %1670 = vst [vmem:[#allocation2 + $0x48] sm:$0xff] %v407
        %1671 = vst [vmem:[#allocation2 + $0x58] sm:$0xff] %v412
        %1672 = vst [vmem:[#allocation2 + $0x68] sm:$0xff] %v417
        %1673 = vst [vmem:[#allocation2 + $0x78] sm:$0xff] %v422
        %v1674 = vld [vmem:[#allocation2] sm:$0xff]
        %v1675 = vld [vmem:[#allocation2 + $0x8] sm:$0xff]
        %v1676 = vld [vmem:[#allocation2 + $0x10] sm:$0xff]
        %v1677 = vld [vmem:[#allocation2 + $0x18] sm:$0xff]
        %v1678 = vld [vmem:[#allocation2 + $0x20] sm:$0xff]
        %v1679 = vld [vmem:[#allocation2 + $0x28] sm:$0xff]
        %v1680 = vld [vmem:[#allocation2 + $0x30] sm:$0xff]
        %v1681 = vld [vmem:[#allocation2 + $0x38] sm:$0xff]
        %v1682 = vld [vmem:[#allocation2 + $0x40] sm:$0xff]
        %v1683 = vld [vmem:[#allocation2 + $0x48] sm:$0xff]
        %v1684 = vld [vmem:[#allocation2 + $0x50] sm:$0xff]
        %v1685 = vld [vmem:[#allocation2 + $0x58] sm:$0xff]
        %v1686 = vld [vmem:[#allocation2 + $0x60] sm:$0xff]
        %v1687 = vld [vmem:[#allocation2 + $0x68] sm:$0xff]
        %v1688 = vld [vmem:[#allocation2 + $0x70] sm:$0xff]
        %v1689 = vld [vmem:[#allocation2 + $0x78] sm:$0xff]
        %v1690 = vld [vmem:[#allocation9] sm:$0xff]
        %v1691 = vld [vmem:[#allocation9 + $0x8] sm:$0xff]
        %v1692 = vld [vmem:[#allocation9 + $0x10] sm:$0xff]
        %v1693 = vld [vmem:[#allocation9 + $0x18] sm:$0xff]
        %v1694 = vld [vmem:[#allocation9 + $0x20] sm:$0xff]
        %v1695 = vld [vmem:[#allocation9 + $0x28] sm:$0xff]
        %v1696 = vld [vmem:[#allocation9 + $0x30] sm:$0xff]
        %v1697 = vld [vmem:[#allocation9 + $0x38] sm:$0xff]
        %v1698 = vld [vmem:[#allocation9 + $0x40] sm:$0xff]
        %v1699 = vld [vmem:[#allocation9 + $0x48] sm:$0xff]
        %v1700 = vld [vmem:[#allocation9 + $0x50] sm:$0xff]
        %v1701 = vld [vmem:[#allocation9 + $0x58] sm:$0xff]
        %v1702 = vld [vmem:[#allocation9 + $0x60] sm:$0xff]
        %v1703 = vld [vmem:[#allocation9 + $0x68] sm:$0xff]
        %v1704 = vld [vmem:[#allocation9 + $0x70] sm:$0xff]
        %v1705 = vld [vmem:[#allocation9 + $0x78] sm:$0xff]
        %v1706 = vld [vmem:[#allocation9 + $0x80] sm:$0xff]
        %v1707 = vld [vmem:[#allocation9 + $0x88] sm:$0xff]
        %v1708 = vld [vmem:[#allocation9 + $0x90] sm:$0xff]
        %v1709 = vld [vmem:[#allocation9 + $0x98] sm:$0xff]
        %v1710 = vld [vmem:[#allocation9 + $0xa0] sm:$0xff]
        %v1711 = vld [vmem:[#allocation9 + $0xa8] sm:$0xff]
        %v1712 = vld [vmem:[#allocation9 + $0xb0] sm:$0xff]
        %v1713 = vld [vmem:[#allocation9 + $0xb8] sm:$0xff]
        %v1714 = vld [vmem:[#allocation9 + $0xc0] sm:$0xff]
        %v1715 = vld [vmem:[#allocation9 + $0xc8] sm:$0xff]
        %v1716 = vld [vmem:[#allocation9 + $0xd0] sm:$0xff]
        %v1717 = vld [vmem:[#allocation9 + $0xd8] sm:$0xff]
        %v1718 = vld [vmem:[#allocation9 + $0xe0] sm:$0xff]
        %v1719 = vld [vmem:[#allocation9 + $0xe8] sm:$0xff]
        %v1720 = vld [vmem:[#allocation9 + $0xf0] sm:$0xff]
        %v1721 = vld [vmem:[#allocation9 + $0xf8] sm:$0xff]
        %1722 = vmatprep.subr.mxu0 0.0
        %1723 = vmatpush1.msra.mxu0 %v1690
        %1724 = vmatprep.subr.mxu0 0.0
        %1725 = vmatpush1.msra.mxu0 %v1691
        %1726 = vmatprep.subr.mxu0 0.0
        %1727 = vmatpush1.msra.mxu0 %v1692
        %1728 = vmatprep.subr.mxu0 0.0
        %1729 = vmatpush1.msra.mxu0 %v1693
        %1730 = vmatprep.subr.mxu0 0.0
        %1731 = vmatpush1.msra.mxu0 %v1694
        %1732 = vmatprep.subr.mxu0 0.0
        %1733 = vmatpush1.msra.mxu0 %v1695
        %1734 = vmatprep.subr.mxu0 0.0
        %1735 = vmatpush1.msra.mxu0 %v1696
        %1736 = vmatprep.subr.mxu0 0.0
        %1737 = vmatpush1.msra.mxu0 %v1697
        %1738 = vmatprep.subr.mxu0 0.0
        %1739 = vmatpush1.msra.mxu0 %v1698
        %1740 = vmatprep.subr.mxu0 0.0
        %1741 = vmatpush1.msra.mxu0 %v1699
        %1742 = vmatprep.subr.mxu0 0.0
        %1743 = vmatpush1.msra.mxu0 %v1700
        %1744 = vmatprep.subr.mxu0 0.0
        %1745 = vmatpush1.msra.mxu0 %v1701
        %1746 = vmatprep.subr.mxu0 0.0
        %1747 = vmatpush1.msra.mxu0 %v1702
        %1748 = vmatprep.subr.mxu0 0.0
        %1749 = vmatpush1.msra.mxu0 %v1703
        %1750 = vmatprep.subr.mxu0 0.0
        %1751 = vmatpush1.msra.mxu0 %v1704
        %1752 = vmatprep.subr.mxu0 0.0
        %1753 = vmatpush1.msra.mxu0 %v1705
        %1754 = vmatprep.subr.mxu0 0.0
        %1755 = vmatpush1.msra.mxu0 %v1706
        %1756 = vmatprep.subr.mxu0 0.0
        %1757 = vmatpush1.msra.mxu0 %v1707
        %1758 = vmatprep.subr.mxu0 0.0
        %1759 = vmatpush1.msra.mxu0 %v1708
        %1760 = vmatprep.subr.mxu0 0.0
        %1761 = vmatpush1.msra.mxu0 %v1709
        %1762 = vmatprep.subr.mxu0 0.0
        %1763 = vmatpush1.msra.mxu0 %v1710
        %1764 = vmatprep.subr.mxu0 0.0
        %1765 = vmatpush1.msra.mxu0 %v1711
        %1766 = vmatprep.subr.mxu0 0.0
        %1767 = vmatpush1.msra.mxu0 %v1712
        %1768 = vmatprep.subr.mxu0 0.0
        %1769 = vmatpush1.msra.mxu0 %v1713
        %1770 = vmatprep.subr.mxu0 0.0
        %1771 = vmatpush1.msra.mxu0 %v1714
        %1772 = vmatprep.subr.mxu0 0.0
        %1773 = vmatpush1.msra.mxu0 %v1715
        %1774 = vmatprep.subr.mxu0 0.0
        %1775 = vmatpush1.msra.mxu0 %v1716
        %1776 = vmatprep.subr.mxu0 0.0
        %1777 = vmatpush1.msra.mxu0 %v1717
        %1778 = vmatprep.subr.mxu0 0.0
        %1779 = vmatpush1.msra.mxu0 %v1718
        %1780 = vmatprep.subr.mxu0 0.0
        %1781 = vmatpush1.msra.mxu0 %v1719
        %1782 = vmatprep.subr.mxu0 0.0
        %1783 = vmatpush1.msra.mxu0 %v1720
        %1784 = vmatprep.subr.mxu0 0.0
        %1785 = vmatpush1.msra.mxu0 %v1721
        %1786 = vmatprep.mubr.f32.mxu0 %v1675
        %1787 = vmatmul.mubr.f32.gmra.mrb[0].mxu0 %v1674
        %v1788 = vpop.f32.mrb[0].mxu0
        %v1789 = vadd.f32 0.0, %v1788
        %v1790 = vpop.f32.mrb[0].mxu0
        %1791 = vmatprep.mubr.f32.mxu0 %v1677
        %1792 = vmatmul.mubr.f32.gmra.mrb[0].mxu0 %v1676
        %v1793 = vpop.f32.mrb[0].mxu0
        %v1794 = vadd.f32 0.0, %v1793
        %v1795 = vpop.f32.mrb[0].mxu0
        %1796 = vmatprep.mubr.f32.mxu0 %v1679
        %1797 = vmatmul.mubr.f32.gmra.mrb[0].mxu0 %v1678
        %v1798 = vpop.f32.mrb[0].mxu0
        %v1799 = vadd.f32 0.0, %v1798
        %v1800 = vpop.f32.mrb[0].mxu0
        %1801 = vmatprep.mubr.f32.mxu0 %v1681
        %1802 = vmatmul.mubr.f32.gmra.mrb[0].mxu0 %v1680
        %v1803 = vpop.f32.mrb[0].mxu0
        %v1804 = vadd.f32 0.0, %v1803
        %v1805 = vpop.f32.mrb[0].mxu0
        %1806 = vmatprep.mubr.f32.mxu0 %v1683
        %1807 = vmatmul.mubr.f32.gmra.mrb[0].mxu0 %v1682
        %v1808 = vpop.f32.mrb[0].mxu0
        %v1809 = vadd.f32 0.0, %v1808
        %v1810 = vpop.f32.mrb[0].mxu0
        %1811 = vmatprep.mubr.f32.mxu0 %v1685
        %1812 = vmatmul.mubr.f32.gmra.mrb[0].mxu0 %v1684
        %v1813 = vpop.f32.mrb[0].mxu0
        %v1814 = vadd.f32 0.0, %v1813
        %v1815 = vpop.f32.mrb[0].mxu0
        %1816 = vmatprep.mubr.f32.mxu0 %v1687
        %1817 = vmatmul.mubr.f32.gmra.mrb[0].mxu0 %v1686
        %v1818 = vpop.f32.mrb[0].mxu0
        %v1819 = vadd.f32 0.0, %v1818
        %v1820 = vpop.f32.mrb[0].mxu0
        %1821 = vmatprep.mubr.f32.mxu0 %v1689
        %1822 = vmatmul.mubr.f32.gmra.mrb[0].mxu0 %v1688
        %v1823 = vpop.f32.mrb[0].mxu0
        %v1824 = vadd.f32 0.0, %v1823
        %v1825 = vpop.f32.mrb[0].mxu0
        %1826 = vdwg.mxu0
        %v1827 = vtanh.pop %v1789
        %v1828 = vtanh.pop %v1794
        %v1829 = vtanh.pop %v1799
        %v1830 = vtanh.pop %v1804
        %v1831 = vtanh.pop %v1809
        %v1832 = vtanh.pop %v1814
        %v1833 = vtanh.pop %v1819
        %v1834 = vtanh.pop %v1824
        %1835 = vst [vmem:[%s284] sm:$0xff] %v1827
        %1836 = vst [vmem:[%s284 + $0x8] sm:$0xff] %v1828
        %1837 = vst [vmem:[%s284 + $0x10] sm:$0xff] %v1829
        %1838 = vst [vmem:[%s284 + $0x18] sm:$0xff] %v1830
        %1839 = vst [vmem:[%s284 + $0x20] sm:$0xff] %v1831
        %1840 = vst [vmem:[%s284 + $0x28] sm:$0xff] %v1832
        %1841 = vst [vmem:[%s284 + $0x30] sm:$0xff] %v1833
        %1842 = vst [vmem:[%s284 + $0x38] sm:$0xff] %v1834
        %s1843 = sand.u32 %s127, 1
        %s1844 = scalar_lea.sflag [#allocation5], %s1843
        %s1845 = sand.u32 %s127, 1
        %s1846 = smul.addr %s1845, 64
        %s1847 = scalar_lea.vmem [#allocation11], %s1846
        // Predicated region
        $region53: #{tpu_custom_call.1} parent=35 // pred_check
          %p1848 = pneg %p137
        $region54: #{tpu_custom_call.1} parent=35 // pred_check_branch
          %1850 = sbr.rel (%p1848) target = $region56
        $region55: #{tpu_custom_call.1} parent=35 // pred_region
          %s1851 = smul.u32 8, %s25
          %s1853 = ssub.s32 1024, 1024
          %1854 = vsyncadd %s1844, %s1853
          %s1855 = smul.addr %s1851, 128
          %s1856 = scalar_lea.hbm %s4, %s1855
          %s1857 = sshll.u32 %s1847, 4
          %s1858 = int_to_ptr.vmem [resolvable:$true] %s1857
          %1863 = dma.vmem_to_hbm [thread:$0]  %s1858, 1024, %s1856, %s1844, 128, 128, 8
        $region56: #{tpu_custom_call.1} parent=35 // pred_fallthru
          _
      $region36: #{tpu_custom_call.1} parent=5 // pred_fallthru
        _
      %p1864 = scmp.le.s32.totalorder 2, %s20
      // Predicated region
      $region57: #{tpu_custom_call.1} parent=5 // pred_check
        %p1865 = pneg %p1864
      $region58: #{tpu_custom_call.1} parent=5 // pred_check_branch
        %1867 = sbr.rel (%p1865) target = $region60
      $region59: #{tpu_custom_call.1} parent=5 // pred_region
        %s1868 = ssub.s32 %s20, 2
        // Predicated region
        $region61: #{tpu_custom_call.1} parent=59 // pred_check
          %p1869 = pneg %p143
        $region62: #{tpu_custom_call.1} parent=59 // pred_check_branch
          %1871 = sbr.rel (%p1869) target = $region64
        $region63: #{tpu_custom_call.1} parent=59 // pred_region
          %s1872 = sand.u32 %s128, 1
          %s1873 = scalar_lea.sflag [#allocation5], %s1872
          %s1874 = sand.u32 %s128, 1
          %s1875 = smul.addr %s1874, 64
          %s1876 = scalar_lea.vmem [#allocation11], %s1875
          %1877 = dma.done %s1873, 1024
        $region64: #{tpu_custom_call.1} parent=59 // pred_fallthru
          _
      $region60: #{tpu_custom_call.1} parent=5 // pred_fallthru
        _
    $region6: #{tpu_custom_call.1} parent=1 // loop_footer
      %s24 = sadd.s32 1, %s20
    $region7: #{tpu_custom_call.1} parent=1 // loop_footer_branch
      %19 = sbr.rel target = $region3
    $region8: #{tpu_custom_call.1} parent=1 // loop_exit
      _
    %1878 = vsyncpa [#allocation4], 1
    %s1879 = scalar_lea.sflag [#allocation4], 1
    %1880 = vsyncpa %s1879, 1
    %1881 = vsyncpa [#allocation7], 1
    %s1882 = scalar_lea.sflag [#allocation7], 1
    %1883 = vsyncpa %s1882, 1
    %1884 = vsyncpa [#allocation10], 1
    %1885 = vsyncpa [#allocation5], 1
    %s1886 = scalar_lea.sflag [#allocation5], 1
    %1887 = vsyncpa %s1886, 1

</llo_original>
